<compile_context>
chip_gen: v5e
topology: v5e:2x2
jax: 0.10.0
libtpu: 0.0.40
codegen_flags: <defaults>
</compile_context>

<pallas_src>
import functools
import random

import jax
import jax.numpy as jnp
from jax.experimental import pallas as pl
from jax.experimental.pallas import tpu as pltpu


# ---------------------------------------------------------------------------
# Fused Seq2Seq kernel
# ---------------------------------------------------------------------------
def seq2seq_kernel(tf_ref,                       # SMEM, (max_len,) int32 scalar-prefetch
                   src_ref,                      # (src_len*Bp, src_feat)
                   trg_ref,                      # (max_len*Bp, trg_feat)
                   enc_w_ih_ref,                 # (src_feat, 4H)
                   enc_w_hh_ref,                 # (H, 4H)
                   enc_b_ref,                    # (1, 4H)
                   dec_w_ih_ref,                 # (trg_feat, 4H)
                   dec_b_ref,                    # (1, 4H)
                   dec_hw_ref,                   # (H, 4H + 4H + trg_feat) = [W_hh | fc@W_ih | fc]
                   fcb_proj_ref,                 # (1, 4H)   fc_b @ W_ih + dec_b
                   fc_b_ref,                     # (1, trg_feat)
                   out_ref,                      # (max_len*Bp, trg_feat)
                   *, src_len, max_len, batch):
    f32 = jnp.float32
    Bp = batch
    H = enc_w_hh_ref.shape[0]
    trg_feat = fc_b_ref.shape[1]

    enc_w_hh = enc_w_hh_ref[...]
    dec_hw = dec_hw_ref[...]

    # --- Hoisted batched input projections: ONE MXU dot each, biases folded in once ---
    srcproj = (jnp.dot(src_ref[...], enc_w_ih_ref[...],
                       preferred_element_type=f32) + enc_b_ref[...])     # (src_len*Bp, 4H)
    trgproj = (jnp.dot(trg_ref[...], dec_w_ih_ref[...],
                       preferred_element_type=f32) + dec_b_ref[...])     # (max_len*Bp, 4H)

    # Hoisted broadcast (JAX does not CSE broadcast_in_dim inside loops).
    fcb_proj = jnp.broadcast_to(fcb_proj_ref[...], (Bp, 4 * H))

    # TODO(synk): with hid_dim=32 each gate slice is a 32-lane sub-vreg slice (relayout on
    # the serial chain); at production size pick hid_dim a multiple of 128 so gates are
    # whole lane tiles.
    def lstm_elem(gates, c):
        i = jax.nn.sigmoid(gates[:, 0 * H:1 * H])
        f = jax.nn.sigmoid(gates[:, 1 * H:2 * H])
        g = jnp.tanh(gates[:, 2 * H:3 * H])
        o = jax.nn.sigmoid(gates[:, 3 * H:4 * H])
        c_new = f * c + i * g
        h_new = o * jnp.tanh(c_new)
        return h_new, c_new

    # ----- encoder: fully unrolled; per-step dependent work = one hid-contraction dot -----
    h = None
    c = jnp.zeros((Bp, H), f32)
    for t in range(src_len):
        gates = srcproj[t * Bp:(t + 1) * Bp, :]
        if t > 0:
            gates = gates + jnp.dot(h, enc_w_hh, preferred_element_type=f32)
        h, c = lstm_elem(gates, c)

    # ----- decoder: one fused dot per step yields hh-gates, output_{t}, output_{t}@W_ih -----
    d = jnp.dot(h, dec_hw, preferred_element_type=f32)   # only [:, :4H] used at step 0
    outs = []
    for t in range(max_len):
        if t == 0:
            xproj = trgproj[0:Bp, :]
        else:
            outs.append(d[:, 8 * H:8 * H + trg_feat])          # output_{t-1} (fc_b added later)
            out_proj = d[:, 4 * H:8 * H] + fcb_proj            # output_{t-1} @ W_ih + dec_b
            tf = tf_ref[t - 1].astype(f32)                     # flag in {0,1} -> blend is exact
            xproj = tf * trgproj[t * Bp:(t + 1) * Bp, :] + (1.0 - tf) * out_proj
        gates = xproj + d[:, 0:4 * H]
        h, c = lstm_elem(gates, c)
        d = jnp.dot(h, dec_hw, preferred_element_type=f32)
    outs.append(d[:, 8 * H:8 * H + trg_feat])                  # output_{max_len-1}

    # Single dense store of a lane-dense 2-D slab; fc_b added once for all steps.
    out_ref[...] = jnp.concatenate(outs, axis=0) + fc_b_ref[...]


# ---------------------------------------------------------------------------
# Wrapper
# ---------------------------------------------------------------------------
def _full_block(shape):
    nd = len(shape)
    # index_map receives (grid index, *scalar-prefetch refs)
    return pl.BlockSpec(shape, lambda i, *prefetch: (0,) * nd)


def seq2seq_forward(src, trg, tf_flags, params):
    """Pallas implementation of Seq2Seq.forward(src, trg). tf_flags must be in {0, 1}."""
    src_len, batch, src_feat = src.shape
    max_len, _, trg_feat = trg.shape

    # Pad batch to a sublane multiple (>= 8); padded rows are independent and sliced off.
    batch_pad = max(8, ((batch + 7) // 8) * 8)
    if batch_pad != batch:
        pad = ((0, 0), (0, batch_pad - batch), (0, 0))
        src = jnp.pad(src, pad)
        trg = jnp.pad(trg, pad)

    # 2-D slabs so the kernel's batched input-projection dots need no in-kernel reshape.
    src2d = src.reshape(src_len * batch_pad, src_feat)
    trg2d = trg.reshape(max_len * batch_pad, trg_feat)

    # Fused decoder h-weight: one dot per step gives [hh-gates | output@W_ih | output].
    dec_hw = jnp.concatenate(
        [params["dec_w_hh"],
         params["dec_w_fc"] @ params["dec_w_ih"],
         params["dec_w_fc"]], axis=1)
    fcb_proj = params["dec_b_fc"] @ params["dec_w_ih"] + params["dec_b"]   # (1, 4H)

    operands = (src2d, trg2d,
                params["enc_w_ih"], params["enc_w_hh"], params["enc_b"],
                params["dec_w_ih"], params["dec_b"],
                dec_hw, fcb_proj,
                params["dec_b_fc"])

    kernel = functools.partial(seq2seq_kernel,
                               src_len=src_len, max_len=max_len, batch=batch_pad)

    grid_spec = pltpu.PrefetchScalarGridSpec(
        num_scalar_prefetch=1,
        grid=(1,),
        in_specs=[_full_block(op.shape) for op in operands],
        out_specs=_full_block((max_len * batch_pad, trg_feat)),
    )

    out = pl.pallas_call(
        kernel,
        out_shape=jax.ShapeDtypeStruct((max_len * batch_pad, trg_feat), jnp.float32),
        grid_spec=grid_spec,
        compiler_params=pltpu.CompilerParams(
            dimension_semantics=("arbitrary",)),
    )(tf_flags, *operands)

    return out.reshape(max_len, batch_pad, trg_feat)[:, :batch, :]


# ---------------------------------------------------------------------------
# Pure-JAX reference (for numerical checking)
# ---------------------------------------------------------------------------
def seq2seq_reference(src, trg, tf_list, params):
    src_len, batch, _ = src.shape
    max_len = trg.shape[0]
    hid_dim = params["enc_w_hh"].shape[0]

    def cell(x, h, c, w_ih, w_hh, b):
        gates = x @ w_ih + h @ w_hh + b
        i = jax.nn.sigmoid(gates[:, 0 * hid_dim:1 * hid_dim])
        f = jax.nn.sigmoid(gates[:, 1 * hid_dim:2 * hid_dim])
        g = jnp.tanh(gates[:, 2 * hid_dim:3 * hid_dim])
        o = jax.nn.sigmoid(gates[:, 3 * hid_dim:4 * hid_dim])
        c_new = f * c + i * g
        return o * jnp.tanh(c_new), c_new

    h = jnp.zeros((batch, hid_dim), jnp.float32)
    c = jnp.zeros((batch, hid_dim), jnp.float32)
    for t in range(src_len):
        h, c = cell(src[t], h, c, params["enc_w_ih"], params["enc_w_hh"], params["enc_b"])

    inp = trg[0]
    outs = []
    for t in range(max_len):
        h, c = cell(inp, h, c, params["dec_w_ih"], params["dec_w_hh"], params["dec_b"])
        output = h @ params["dec_w_fc"] + params["dec_b_fc"]
        outs.append(output)
        if t < max_len - 1:
            inp = trg[t + 1] if bool(tf_list[t]) else output
    return jnp.stack(outs)


# ---------------------------------------------------------------------------
# Main
# ---------------------------------------------------------------------------
if __name__ == "__main__":
    # Small deterministic config implied by the forward pass.
    src_len, max_len = 10, 8
    batch = 4
    src_feat, trg_feat = 8, 8
    hid_dim = 32                       # 4*hid_dim = 128 -> lane-aligned gate block

    key = jax.random.PRNGKey(0)
    ks = jax.random.split(key, 12)
    scale = 1.0 / (hid_dim ** 0.5)
    u = lambda k, shape: jax.random.uniform(k, shape, jnp.float32, -scale, scale)

    params = {
        "enc_w_ih": u(ks[0], (src_feat, 4 * hid_dim)),
        "enc_w_hh": u(ks[1], (hid_dim, 4 * hid_dim)),
        "enc_b":    u(ks[2], (1, 4 * hid_dim)),          # b_ih + b_hh combined
        "dec_w_ih": u(ks[3], (trg_feat, 4 * hid_dim)),
        "dec_w_hh": u(ks[4], (hid_dim, 4 * hid_dim)),
        "dec_b":    u(ks[5], (1, 4 * hid_dim)),
        "dec_w_fc": u(ks[6], (hid_dim, trg_feat)),
        "dec_b_fc": u(ks[7], (1, trg_feat)),
    }

    src = jax.random.normal(ks[8], (src_len, batch, src_feat), jnp.float32)
    trg = jax.random.normal(ks[9], (max_len, batch, trg_feat), jnp.float32)

    # Teacher-forcing coin flips (torch: random.random() < 0.5), seeded host-side.
    random.seed(0)
    teacher_forcing_ratio = 0.5
    tf_list = [1 if random.random() < teacher_forcing_ratio else 0
               for _ in range(max_len)]
    # The in-kernel blend is exact only for flags in {0, 1}.
    assert all(f in (0, 1) for f in tf_list)
    tf_flags = jnp.asarray(tf_list, dtype=jnp.int32)

    outputs = seq2seq_forward(src, trg, tf_flags, params)
    outputs = jax.block_until_ready(outputs)

    ref = seq2seq_reference(src, trg, tf_list, params)
    assert outputs.shape == (max_len, batch, trg_feat)
    assert jnp.allclose(outputs, ref, atol=1e-4, rtol=1e-4)

    print("KERNEL_OK")
</pallas_src>

<mosaic_0001>
module attributes {stable_mosaic.version = 11 : i64} {
  func.func @seq2seq_kernel(%arg0: i32, %arg1: memref<8xi32, #tpu.memory_space<smem>>, %arg2: memref<80x8xf32, #tpu.memory_space<vmem>>, %arg3: memref<64x8xf32, #tpu.memory_space<vmem>>, %arg4: memref<8x128xf32, #tpu.memory_space<vmem>>, %arg5: memref<32x128xf32, #tpu.memory_space<vmem>>, %arg6: memref<1x128xf32, #tpu.memory_space<vmem>>, %arg7: memref<8x128xf32, #tpu.memory_space<vmem>>, %arg8: memref<1x128xf32, #tpu.memory_space<vmem>>, %arg9: memref<32x264xf32, #tpu.memory_space<vmem>>, %arg10: memref<1x128xf32, #tpu.memory_space<vmem>>, %arg11: memref<1x8xf32, #tpu.memory_space<vmem>>, %arg12: memref<64x8xf32, #tpu.memory_space<vmem>>) attributes {dimension_semantics = [#tpu.dimension_semantics<arbitrary>], iteration_bounds = array<i64: 1>, scalar_prefetch = 1 : i64, scratch_operands = 0 : i64, tpu.core_type = #tpu.core_type<tc>, window_params = [{pipeline_mode = #tpu.pipeline_mode<synchronous>, transform_indices = @transform_0, window_bounds = array<i64: 80, 8>}, {pipeline_mode = #tpu.pipeline_mode<synchronous>, transform_indices = @transform_1, window_bounds = array<i64: 64, 8>}, {pipeline_mode = #tpu.pipeline_mode<synchronous>, transform_indices = @transform_2, window_bounds = array<i64: 8, 128>}, {pipeline_mode = #tpu.pipeline_mode<synchronous>, transform_indices = @transform_3, window_bounds = array<i64: 32, 128>}, {pipeline_mode = #tpu.pipeline_mode<synchronous>, transform_indices = @transform_4, window_bounds = array<i64: 1, 128>}, {pipeline_mode = #tpu.pipeline_mode<synchronous>, transform_indices = @transform_5, window_bounds = array<i64: 8, 128>}, {pipeline_mode = #tpu.pipeline_mode<synchronous>, transform_indices = @transform_6, window_bounds = array<i64: 1, 128>}, {pipeline_mode = #tpu.pipeline_mode<synchronous>, transform_indices = @transform_7, window_bounds = array<i64: 32, 264>}, {pipeline_mode = #tpu.pipeline_mode<synchronous>, transform_indices = @transform_8, window_bounds = array<i64: 1, 128>}, {pipeline_mode = #tpu.pipeline_mode<synchronous>, transform_indices = @transform_9, window_bounds = array<i64: 1, 8>}, {pipeline_mode = #tpu.pipeline_mode<synchronous>, transform_indices = @transform_10, window_bounds = array<i64: 64, 8>}]} {
    %c0 = arith.constant 0 : index
    %c0_0 = arith.constant 0 : index
    %0 = vector.load %arg5[%c0, %c0_0] : memref<32x128xf32, #tpu.memory_space<vmem>>, vector<32x128xf32>
    %c0_1 = arith.constant 0 : index
    %c0_2 = arith.constant 0 : index
    %1 = vector.load %arg9[%c0_1, %c0_2] : memref<32x264xf32, #tpu.memory_space<vmem>>, vector<32x264xf32>
    %c0_3 = arith.constant 0 : index
    %c0_4 = arith.constant 0 : index
    %2 = vector.load %arg2[%c0_3, %c0_4] : memref<80x8xf32, #tpu.memory_space<vmem>>, vector<80x8xf32>
    %c0_5 = arith.constant 0 : index
    %c0_6 = arith.constant 0 : index
    %3 = vector.load %arg4[%c0_5, %c0_6] : memref<8x128xf32, #tpu.memory_space<vmem>>, vector<8x128xf32>
    %cst = arith.constant dense<0.000000e+00> : vector<80x128xf32>
    %4 = tpu.matmul %2, %3, %cst {dimension_numbers = #tpu.dot_dimension_numbers<[1], [0], [0], [1], [0, 0, 1, 1], [], []>} : vector<80x8xf32>, vector<8x128xf32>, vector<80x128xf32> -> vector<80x128xf32>
    %c0_7 = arith.constant 0 : index
    %c0_8 = arith.constant 0 : index
    %5 = vector.load %arg6[%c0_7, %c0_8] : memref<1x128xf32, #tpu.memory_space<vmem>>, vector<1x128xf32>
    %6 = vector.broadcast %5 : vector<1x128xf32> to vector<80x128xf32>
    %7 = arith.addf %4, %6 : vector<80x128xf32>
    %c0_9 = arith.constant 0 : index
    %c0_10 = arith.constant 0 : index
    %8 = vector.load %arg3[%c0_9, %c0_10] : memref<64x8xf32, #tpu.memory_space<vmem>>, vector<64x8xf32>
    %c0_11 = arith.constant 0 : index
    %c0_12 = arith.constant 0 : index
    %9 = vector.load %arg7[%c0_11, %c0_12] : memref<8x128xf32, #tpu.memory_space<vmem>>, vector<8x128xf32>
    %cst_13 = arith.constant dense<0.000000e+00> : vector<64x128xf32>
    %10 = tpu.matmul %8, %9, %cst_13 {dimension_numbers = #tpu.dot_dimension_numbers<[1], [0], [0], [1], [0, 0, 1, 1], [], []>} : vector<64x8xf32>, vector<8x128xf32>, vector<64x128xf32> -> vector<64x128xf32>
    %c0_14 = arith.constant 0 : index
    %c0_15 = arith.constant 0 : index
    %11 = vector.load %arg8[%c0_14, %c0_15] : memref<1x128xf32, #tpu.memory_space<vmem>>, vector<1x128xf32>
    %12 = vector.broadcast %11 : vector<1x128xf32> to vector<64x128xf32>
    %13 = arith.addf %10, %12 : vector<64x128xf32>
    %c0_16 = arith.constant 0 : index
    %c0_17 = arith.constant 0 : index
    %14 = vector.load %arg10[%c0_16, %c0_17] : memref<1x128xf32, #tpu.memory_space<vmem>>, vector<1x128xf32>
    %15 = vector.shape_cast %14 : vector<1x128xf32> to vector<1x128xf32>
    %16 = vector.broadcast %15 : vector<1x128xf32> to vector<8x128xf32>
    %cst_18 = arith.constant 0.000000e+00 : f32
    %17 = vector.broadcast %cst_18 : f32 to vector<8x32xf32>
    %18 = vector.extract_strided_slice %7 {offsets = [0, 0], sizes = [8, 128], strides = [1, 1]} : vector<80x128xf32> to vector<8x128xf32>
    %19 = vector.extract_strided_slice %18 {offsets = [0, 0], sizes = [8, 32], strides = [1, 1]} : vector<8x128xf32> to vector<8x32xf32>
    %20 = arith.negf %19 : vector<8x32xf32>
    %21 = math.exp %20 : vector<8x32xf32>
    %cst_19 = arith.constant 1.000000e+00 : f32
    %22 = vector.broadcast %cst_19 : f32 to vector<8x32xf32>
    %23 = arith.addf %22, %21 : vector<8x32xf32>
    %24 = arith.divf %22, %23 : vector<8x32xf32>
    %25 = vector.extract_strided_slice %18 {offsets = [0, 32], sizes = [8, 32], strides = [1, 1]} : vector<8x128xf32> to vector<8x32xf32>
    %26 = arith.negf %25 : vector<8x32xf32>
    %27 = math.exp %26 : vector<8x32xf32>
    %cst_20 = arith.constant 1.000000e+00 : f32
    %28 = vector.broadcast %cst_20 : f32 to vector<8x32xf32>
    %29 = arith.addf %28, %27 : vector<8x32xf32>
    %30 = arith.divf %28, %29 : vector<8x32xf32>
    %31 = vector.extract_strided_slice %18 {offsets = [0, 64], sizes = [8, 32], strides = [1, 1]} : vector<8x128xf32> to vector<8x32xf32>
    %32 = math.tanh %31 : vector<8x32xf32>
    %33 = vector.extract_strided_slice %18 {offsets = [0, 96], sizes = [8, 32], strides = [1, 1]} : vector<8x128xf32> to vector<8x32xf32>
    %34 = arith.negf %33 : vector<8x32xf32>
    %35 = math.exp %34 : vector<8x32xf32>
    %cst_21 = arith.constant 1.000000e+00 : f32
    %36 = vector.broadcast %cst_21 : f32 to vector<8x32xf32>
    %37 = arith.addf %36, %35 : vector<8x32xf32>
    %38 = arith.divf %36, %37 : vector<8x32xf32>
    %39 = arith.mulf %30, %17 : vector<8x32xf32>
    %40 = arith.mulf %24, %32 : vector<8x32xf32>
    %41 = arith.addf %39, %40 : vector<8x32xf32>
    %42 = math.tanh %41 : vector<8x32xf32>
    %43 = arith.mulf %38, %42 : vector<8x32xf32>
    %44 = vector.extract_strided_slice %7 {offsets = [8, 0], sizes = [8, 128], strides = [1, 1]} : vector<80x128xf32> to vector<8x128xf32>
    %cst_22 = arith.constant dense<0.000000e+00> : vector<8x128xf32>
    %45 = tpu.matmul %43, %0, %cst_22 {dimension_numbers = #tpu.dot_dimension_numbers<[1], [0], [0], [1], [0, 0, 1, 1], [], []>} : vector<8x32xf32>, vector<32x128xf32>, vector<8x128xf32> -> vector<8x128xf32>
    %46 = arith.addf %44, %45 : vector<8x128xf32>
    %47 = vector.extract_strided_slice %46 {offsets = [0, 0], sizes = [8, 32], strides = [1, 1]} : vector<8x128xf32> to vector<8x32xf32>
    %48 = arith.negf %47 : vector<8x32xf32>
    %49 = math.exp %48 : vector<8x32xf32>
    %cst_23 = arith.constant 1.000000e+00 : f32
    %50 = vector.broadcast %cst_23 : f32 to vector<8x32xf32>
    %51 = arith.addf %50, %49 : vector<8x32xf32>
    %52 = arith.divf %50, %51 : vector<8x32xf32>
    %53 = vector.extract_strided_slice %46 {offsets = [0, 32], sizes = [8, 32], strides = [1, 1]} : vector<8x128xf32> to vector<8x32xf32>
    %54 = arith.negf %53 : vector<8x32xf32>
    %55 = math.exp %54 : vector<8x32xf32>
    %cst_24 = arith.constant 1.000000e+00 : f32
    %56 = vector.broadcast %cst_24 : f32 to vector<8x32xf32>
    %57 = arith.addf %56, %55 : vector<8x32xf32>
    %58 = arith.divf %56, %57 : vector<8x32xf32>
    %59 = vector.extract_strided_slice %46 {offsets = [0, 64], sizes = [8, 32], strides = [1, 1]} : vector<8x128xf32> to vector<8x32xf32>
    %60 = math.tanh %59 : vector<8x32xf32>
    %61 = vector.extract_strided_slice %46 {offsets = [0, 96], sizes = [8, 32], strides = [1, 1]} : vector<8x128xf32> to vector<8x32xf32>
    %62 = arith.negf %61 : vector<8x32xf32>
    %63 = math.exp %62 : vector<8x32xf32>
    %cst_25 = arith.constant 1.000000e+00 : f32
    %64 = vector.broadcast %cst_25 : f32 to vector<8x32xf32>
    %65 = arith.addf %64, %63 : vector<8x32xf32>
    %66 = arith.divf %64, %65 : vector<8x32xf32>
    %67 = arith.mulf %58, %41 : vector<8x32xf32>
    %68 = arith.mulf %52, %60 : vector<8x32xf32>
    %69 = arith.addf %67, %68 : vector<8x32xf32>
    %70 = math.tanh %69 : vector<8x32xf32>
    %71 = arith.mulf %66, %70 : vector<8x32xf32>
    %72 = vector.extract_strided_slice %7 {offsets = [16, 0], sizes = [8, 128], strides = [1, 1]} : vector<80x128xf32> to vector<8x128xf32>
    %cst_26 = arith.constant dense<0.000000e+00> : vector<8x128xf32>
    %73 = tpu.matmul %71, %0, %cst_26 {dimension_numbers = #tpu.dot_dimension_numbers<[1], [0], [0], [1], [0, 0, 1, 1], [], []>} : vector<8x32xf32>, vector<32x128xf32>, vector<8x128xf32> -> vector<8x128xf32>
    %74 = arith.addf %72, %73 : vector<8x128xf32>
    %75 = vector.extract_strided_slice %74 {offsets = [0, 0], sizes = [8, 32], strides = [1, 1]} : vector<8x128xf32> to vector<8x32xf32>
    %76 = arith.negf %75 : vector<8x32xf32>
    %77 = math.exp %76 : vector<8x32xf32>
    %cst_27 = arith.constant 1.000000e+00 : f32
    %78 = vector.broadcast %cst_27 : f32 to vector<8x32xf32>
    %79 = arith.addf %78, %77 : vector<8x32xf32>
    %80 = arith.divf %78, %79 : vector<8x32xf32>
    %81 = vector.extract_strided_slice %74 {offsets = [0, 32], sizes = [8, 32], strides = [1, 1]} : vector<8x128xf32> to vector<8x32xf32>
    %82 = arith.negf %81 : vector<8x32xf32>
    %83 = math.exp %82 : vector<8x32xf32>
    %cst_28 = arith.constant 1.000000e+00 : f32
    %84 = vector.broadcast %cst_28 : f32 to vector<8x32xf32>
    %85 = arith.addf %84, %83 : vector<8x32xf32>
    %86 = arith.divf %84, %85 : vector<8x32xf32>
    %87 = vector.extract_strided_slice %74 {offsets = [0, 64], sizes = [8, 32], strides = [1, 1]} : vector<8x128xf32> to vector<8x32xf32>
    %88 = math.tanh %87 : vector<8x32xf32>
    %89 = vector.extract_strided_slice %74 {offsets = [0, 96], sizes = [8, 32], strides = [1, 1]} : vector<8x128xf32> to vector<8x32xf32>
    %90 = arith.negf %89 : vector<8x32xf32>
    %91 = math.exp %90 : vector<8x32xf32>
    %cst_29 = arith.constant 1.000000e+00 : f32
    %92 = vector.broadcast %cst_29 : f32 to vector<8x32xf32>
    %93 = arith.addf %92, %91 : vector<8x32xf32>
    %94 = arith.divf %92, %93 : vector<8x32xf32>
    %95 = arith.mulf %86, %69 : vector<8x32xf32>
    %96 = arith.mulf %80, %88 : vector<8x32xf32>
    %97 = arith.addf %95, %96 : vector<8x32xf32>
    %98 = math.tanh %97 : vector<8x32xf32>
    %99 = arith.mulf %94, %98 : vector<8x32xf32>
    %100 = vector.extract_strided_slice %7 {offsets = [24, 0], sizes = [8, 128], strides = [1, 1]} : vector<80x128xf32> to vector<8x128xf32>
    %cst_30 = arith.constant dense<0.000000e+00> : vector<8x128xf32>
    %101 = tpu.matmul %99, %0, %cst_30 {dimension_numbers = #tpu.dot_dimension_numbers<[1], [0], [0], [1], [0, 0, 1, 1], [], []>} : vector<8x32xf32>, vector<32x128xf32>, vector<8x128xf32> -> vector<8x128xf32>
    %102 = arith.addf %100, %101 : vector<8x128xf32>
    %103 = vector.extract_strided_slice %102 {offsets = [0, 0], sizes = [8, 32], strides = [1, 1]} : vector<8x128xf32> to vector<8x32xf32>
    %104 = arith.negf %103 : vector<8x32xf32>
    %105 = math.exp %104 : vector<8x32xf32>
    %cst_31 = arith.constant 1.000000e+00 : f32
    %106 = vector.broadcast %cst_31 : f32 to vector<8x32xf32>
    %107 = arith.addf %106, %105 : vector<8x32xf32>
    %108 = arith.divf %106, %107 : vector<8x32xf32>
    %109 = vector.extract_strided_slice %102 {offsets = [0, 32], sizes = [8, 32], strides = [1, 1]} : vector<8x128xf32> to vector<8x32xf32>
    %110 = arith.negf %109 : vector<8x32xf32>
    %111 = math.exp %110 : vector<8x32xf32>
    %cst_32 = arith.constant 1.000000e+00 : f32
    %112 = vector.broadcast %cst_32 : f32 to vector<8x32xf32>
    %113 = arith.addf %112, %111 : vector<8x32xf32>
    %114 = arith.divf %112, %113 : vector<8x32xf32>
    %115 = vector.extract_strided_slice %102 {offsets = [0, 64], sizes = [8, 32], strides = [1, 1]} : vector<8x128xf32> to vector<8x32xf32>
    %116 = math.tanh %115 : vector<8x32xf32>
    %117 = vector.extract_strided_slice %102 {offsets = [0, 96], sizes = [8, 32], strides = [1, 1]} : vector<8x128xf32> to vector<8x32xf32>
    %118 = arith.negf %117 : vector<8x32xf32>
    %119 = math.exp %118 : vector<8x32xf32>
    %cst_33 = arith.constant 1.000000e+00 : f32
    %120 = vector.broadcast %cst_33 : f32 to vector<8x32xf32>
    %121 = arith.addf %120, %119 : vector<8x32xf32>
    %122 = arith.divf %120, %121 : vector<8x32xf32>
    %123 = arith.mulf %114, %97 : vector<8x32xf32>
    %124 = arith.mulf %108, %116 : vector<8x32xf32>
    %125 = arith.addf %123, %124 : vector<8x32xf32>
    %126 = math.tanh %125 : vector<8x32xf32>
    %127 = arith.mulf %122, %126 : vector<8x32xf32>
    %128 = vector.extract_strided_slice %7 {offsets = [32, 0], sizes = [8, 128], strides = [1, 1]} : vector<80x128xf32> to vector<8x128xf32>
    %cst_34 = arith.constant dense<0.000000e+00> : vector<8x128xf32>
    %129 = tpu.matmul %127, %0, %cst_34 {dimension_numbers = #tpu.dot_dimension_numbers<[1], [0], [0], [1], [0, 0, 1, 1], [], []>} : vector<8x32xf32>, vector<32x128xf32>, vector<8x128xf32> -> vector<8x128xf32>
    %130 = arith.addf %128, %129 : vector<8x128xf32>
    %131 = vector.extract_strided_slice %130 {offsets = [0, 0], sizes = [8, 32], strides = [1, 1]} : vector<8x128xf32> to vector<8x32xf32>
    %132 = arith.negf %131 : vector<8x32xf32>
    %133 = math.exp %132 : vector<8x32xf32>
    %cst_35 = arith.constant 1.000000e+00 : f32
    %134 = vector.broadcast %cst_35 : f32 to vector<8x32xf32>
    %135 = arith.addf %134, %133 : vector<8x32xf32>
    %136 = arith.divf %134, %135 : vector<8x32xf32>
    %137 = vector.extract_strided_slice %130 {offsets = [0, 32], sizes = [8, 32], strides = [1, 1]} : vector<8x128xf32> to vector<8x32xf32>
    %138 = arith.negf %137 : vector<8x32xf32>
    %139 = math.exp %138 : vector<8x32xf32>
    %cst_36 = arith.constant 1.000000e+00 : f32
    %140 = vector.broadcast %cst_36 : f32 to vector<8x32xf32>
    %141 = arith.addf %140, %139 : vector<8x32xf32>
    %142 = arith.divf %140, %141 : vector<8x32xf32>
    %143 = vector.extract_strided_slice %130 {offsets = [0, 64], sizes = [8, 32], strides = [1, 1]} : vector<8x128xf32> to vector<8x32xf32>
    %144 = math.tanh %143 : vector<8x32xf32>
    %145 = vector.extract_strided_slice %130 {offsets = [0, 96], sizes = [8, 32], strides = [1, 1]} : vector<8x128xf32> to vector<8x32xf32>
    %146 = arith.negf %145 : vector<8x32xf32>
    %147 = math.exp %146 : vector<8x32xf32>
    %cst_37 = arith.constant 1.000000e+00 : f32
    %148 = vector.broadcast %cst_37 : f32 to vector<8x32xf32>
    %149 = arith.addf %148, %147 : vector<8x32xf32>
    %150 = arith.divf %148, %149 : vector<8x32xf32>
    %151 = arith.mulf %142, %125 : vector<8x32xf32>
    %152 = arith.mulf %136, %144 : vector<8x32xf32>
    %153 = arith.addf %151, %152 : vector<8x32xf32>
    %154 = math.tanh %153 : vector<8x32xf32>
    %155 = arith.mulf %150, %154 : vector<8x32xf32>
    %156 = vector.extract_strided_slice %7 {offsets = [40, 0], sizes = [8, 128], strides = [1, 1]} : vector<80x128xf32> to vector<8x128xf32>
    %cst_38 = arith.constant dense<0.000000e+00> : vector<8x128xf32>
    %157 = tpu.matmul %155, %0, %cst_38 {dimension_numbers = #tpu.dot_dimension_numbers<[1], [0], [0], [1], [0, 0, 1, 1], [], []>} : vector<8x32xf32>, vector<32x128xf32>, vector<8x128xf32> -> vector<8x128xf32>
    %158 = arith.addf %156, %157 : vector<8x128xf32>
    %159 = vector.extract_strided_slice %158 {offsets = [0, 0], sizes = [8, 32], strides = [1, 1]} : vector<8x128xf32> to vector<8x32xf32>
    %160 = arith.negf %159 : vector<8x32xf32>
    %161 = math.exp %160 : vector<8x32xf32>
    %cst_39 = arith.constant 1.000000e+00 : f32
    %162 = vector.broadcast %cst_39 : f32 to vector<8x32xf32>
    %163 = arith.addf %162, %161 : vector<8x32xf32>
    %164 = arith.divf %162, %163 : vector<8x32xf32>
    %165 = vector.extract_strided_slice %158 {offsets = [0, 32], sizes = [8, 32], strides = [1, 1]} : vector<8x128xf32> to vector<8x32xf32>
    %166 = arith.negf %165 : vector<8x32xf32>
    %167 = math.exp %166 : vector<8x32xf32>
    %cst_40 = arith.constant 1.000000e+00 : f32
    %168 = vector.broadcast %cst_40 : f32 to vector<8x32xf32>
    %169 = arith.addf %168, %167 : vector<8x32xf32>
    %170 = arith.divf %168, %169 : vector<8x32xf32>
    %171 = vector.extract_strided_slice %158 {offsets = [0, 64], sizes = [8, 32], strides = [1, 1]} : vector<8x128xf32> to vector<8x32xf32>
    %172 = math.tanh %171 : vector<8x32xf32>
    %173 = vector.extract_strided_slice %158 {offsets = [0, 96], sizes = [8, 32], strides = [1, 1]} : vector<8x128xf32> to vector<8x32xf32>
    %174 = arith.negf %173 : vector<8x32xf32>
    %175 = math.exp %174 : vector<8x32xf32>
    %cst_41 = arith.constant 1.000000e+00 : f32
    %176 = vector.broadcast %cst_41 : f32 to vector<8x32xf32>
    %177 = arith.addf %176, %175 : vector<8x32xf32>
    %178 = arith.divf %176, %177 : vector<8x32xf32>
    %179 = arith.mulf %170, %153 : vector<8x32xf32>
    %180 = arith.mulf %164, %172 : vector<8x32xf32>
    %181 = arith.addf %179, %180 : vector<8x32xf32>
    %182 = math.tanh %181 : vector<8x32xf32>
    %183 = arith.mulf %178, %182 : vector<8x32xf32>
    %184 = vector.extract_strided_slice %7 {offsets = [48, 0], sizes = [8, 128], strides = [1, 1]} : vector<80x128xf32> to vector<8x128xf32>
    %cst_42 = arith.constant dense<0.000000e+00> : vector<8x128xf32>
    %185 = tpu.matmul %183, %0, %cst_42 {dimension_numbers = #tpu.dot_dimension_numbers<[1], [0], [0], [1], [0, 0, 1, 1], [], []>} : vector<8x32xf32>, vector<32x128xf32>, vector<8x128xf32> -> vector<8x128xf32>
    %186 = arith.addf %184, %185 : vector<8x128xf32>
    %187 = vector.extract_strided_slice %186 {offsets = [0, 0], sizes = [8, 32], strides = [1, 1]} : vector<8x128xf32> to vector<8x32xf32>
    %188 = arith.negf %187 : vector<8x32xf32>
    %189 = math.exp %188 : vector<8x32xf32>
    %cst_43 = arith.constant 1.000000e+00 : f32
    %190 = vector.broadcast %cst_43 : f32 to vector<8x32xf32>
    %191 = arith.addf %190, %189 : vector<8x32xf32>
    %192 = arith.divf %190, %191 : vector<8x32xf32>
    %193 = vector.extract_strided_slice %186 {offsets = [0, 32], sizes = [8, 32], strides = [1, 1]} : vector<8x128xf32> to vector<8x32xf32>
    %194 = arith.negf %193 : vector<8x32xf32>
    %195 = math.exp %194 : vector<8x32xf32>
    %cst_44 = arith.constant 1.000000e+00 : f32
    %196 = vector.broadcast %cst_44 : f32 to vector<8x32xf32>
    %197 = arith.addf %196, %195 : vector<8x32xf32>
    %198 = arith.divf %196, %197 : vector<8x32xf32>
    %199 = vector.extract_strided_slice %186 {offsets = [0, 64], sizes = [8, 32], strides = [1, 1]} : vector<8x128xf32> to vector<8x32xf32>
    %200 = math.tanh %199 : vector<8x32xf32>
    %201 = vector.extract_strided_slice %186 {offsets = [0, 96], sizes = [8, 32], strides = [1, 1]} : vector<8x128xf32> to vector<8x32xf32>
    %202 = arith.negf %201 : vector<8x32xf32>
    %203 = math.exp %202 : vector<8x32xf32>
    %cst_45 = arith.constant 1.000000e+00 : f32
    %204 = vector.broadcast %cst_45 : f32 to vector<8x32xf32>
    %205 = arith.addf %204, %203 : vector<8x32xf32>
    %206 = arith.divf %204, %205 : vector<8x32xf32>
    %207 = arith.mulf %198, %181 : vector<8x32xf32>
    %208 = arith.mulf %192, %200 : vector<8x32xf32>
    %209 = arith.addf %207, %208 : vector<8x32xf32>
    %210 = math.tanh %209 : vector<8x32xf32>
    %211 = arith.mulf %206, %210 : vector<8x32xf32>
    %212 = vector.extract_strided_slice %7 {offsets = [56, 0], sizes = [8, 128], strides = [1, 1]} : vector<80x128xf32> to vector<8x128xf32>
    %cst_46 = arith.constant dense<0.000000e+00> : vector<8x128xf32>
    %213 = tpu.matmul %211, %0, %cst_46 {dimension_numbers = #tpu.dot_dimension_numbers<[1], [0], [0], [1], [0, 0, 1, 1], [], []>} : vector<8x32xf32>, vector<32x128xf32>, vector<8x128xf32> -> vector<8x128xf32>
    %214 = arith.addf %212, %213 : vector<8x128xf32>
    %215 = vector.extract_strided_slice %214 {offsets = [0, 0], sizes = [8, 32], strides = [1, 1]} : vector<8x128xf32> to vector<8x32xf32>
    %216 = arith.negf %215 : vector<8x32xf32>
    %217 = math.exp %216 : vector<8x32xf32>
    %cst_47 = arith.constant 1.000000e+00 : f32
    %218 = vector.broadcast %cst_47 : f32 to vector<8x32xf32>
    %219 = arith.addf %218, %217 : vector<8x32xf32>
    %220 = arith.divf %218, %219 : vector<8x32xf32>
    %221 = vector.extract_strided_slice %214 {offsets = [0, 32], sizes = [8, 32], strides = [1, 1]} : vector<8x128xf32> to vector<8x32xf32>
    %222 = arith.negf %221 : vector<8x32xf32>
    %223 = math.exp %222 : vector<8x32xf32>
    %cst_48 = arith.constant 1.000000e+00 : f32
    %224 = vector.broadcast %cst_48 : f32 to vector<8x32xf32>
    %225 = arith.addf %224, %223 : vector<8x32xf32>
    %226 = arith.divf %224, %225 : vector<8x32xf32>
    %227 = vector.extract_strided_slice %214 {offsets = [0, 64], sizes = [8, 32], strides = [1, 1]} : vector<8x128xf32> to vector<8x32xf32>
    %228 = math.tanh %227 : vector<8x32xf32>
    %229 = vector.extract_strided_slice %214 {offsets = [0, 96], sizes = [8, 32], strides = [1, 1]} : vector<8x128xf32> to vector<8x32xf32>
    %230 = arith.negf %229 : vector<8x32xf32>
    %231 = math.exp %230 : vector<8x32xf32>
    %cst_49 = arith.constant 1.000000e+00 : f32
    %232 = vector.broadcast %cst_49 : f32 to vector<8x32xf32>
    %233 = arith.addf %232, %231 : vector<8x32xf32>
    %234 = arith.divf %232, %233 : vector<8x32xf32>
    %235 = arith.mulf %226, %209 : vector<8x32xf32>
    %236 = arith.mulf %220, %228 : vector<8x32xf32>
    %237 = arith.addf %235, %236 : vector<8x32xf32>
    %238 = math.tanh %237 : vector<8x32xf32>
    %239 = arith.mulf %234, %238 : vector<8x32xf32>
    %240 = vector.extract_strided_slice %7 {offsets = [64, 0], sizes = [8, 128], strides = [1, 1]} : vector<80x128xf32> to vector<8x128xf32>
    %cst_50 = arith.constant dense<0.000000e+00> : vector<8x128xf32>
    %241 = tpu.matmul %239, %0, %cst_50 {dimension_numbers = #tpu.dot_dimension_numbers<[1], [0], [0], [1], [0, 0, 1, 1], [], []>} : vector<8x32xf32>, vector<32x128xf32>, vector<8x128xf32> -> vector<8x128xf32>
    %242 = arith.addf %240, %241 : vector<8x128xf32>
    %243 = vector.extract_strided_slice %242 {offsets = [0, 0], sizes = [8, 32], strides = [1, 1]} : vector<8x128xf32> to vector<8x32xf32>
    %244 = arith.negf %243 : vector<8x32xf32>
    %245 = math.exp %244 : vector<8x32xf32>
    %cst_51 = arith.constant 1.000000e+00 : f32
    %246 = vector.broadcast %cst_51 : f32 to vector<8x32xf32>
    %247 = arith.addf %246, %245 : vector<8x32xf32>
    %248 = arith.divf %246, %247 : vector<8x32xf32>
    %249 = vector.extract_strided_slice %242 {offsets = [0, 32], sizes = [8, 32], strides = [1, 1]} : vector<8x128xf32> to vector<8x32xf32>
    %250 = arith.negf %249 : vector<8x32xf32>
    %251 = math.exp %250 : vector<8x32xf32>
    %cst_52 = arith.constant 1.000000e+00 : f32
    %252 = vector.broadcast %cst_52 : f32 to vector<8x32xf32>
    %253 = arith.addf %252, %251 : vector<8x32xf32>
    %254 = arith.divf %252, %253 : vector<8x32xf32>
    %255 = vector.extract_strided_slice %242 {offsets = [0, 64], sizes = [8, 32], strides = [1, 1]} : vector<8x128xf32> to vector<8x32xf32>
    %256 = math.tanh %255 : vector<8x32xf32>
    %257 = vector.extract_strided_slice %242 {offsets = [0, 96], sizes = [8, 32], strides = [1, 1]} : vector<8x128xf32> to vector<8x32xf32>
    %258 = arith.negf %257 : vector<8x32xf32>
    %259 = math.exp %258 : vector<8x32xf32>
    %cst_53 = arith.constant 1.000000e+00 : f32
    %260 = vector.broadcast %cst_53 : f32 to vector<8x32xf32>
    %261 = arith.addf %260, %259 : vector<8x32xf32>
    %262 = arith.divf %260, %261 : vector<8x32xf32>
    %263 = arith.mulf %254, %237 : vector<8x32xf32>
    %264 = arith.mulf %248, %256 : vector<8x32xf32>
    %265 = arith.addf %263, %264 : vector<8x32xf32>
    %266 = math.tanh %265 : vector<8x32xf32>
    %267 = arith.mulf %262, %266 : vector<8x32xf32>
    %268 = vector.extract_strided_slice %7 {offsets = [72, 0], sizes = [8, 128], strides = [1, 1]} : vector<80x128xf32> to vector<8x128xf32>
    %cst_54 = arith.constant dense<0.000000e+00> : vector<8x128xf32>
    %269 = tpu.matmul %267, %0, %cst_54 {dimension_numbers = #tpu.dot_dimension_numbers<[1], [0], [0], [1], [0, 0, 1, 1], [], []>} : vector<8x32xf32>, vector<32x128xf32>, vector<8x128xf32> -> vector<8x128xf32>
    %270 = arith.addf %268, %269 : vector<8x128xf32>
    %271 = vector.extract_strided_slice %270 {offsets = [0, 0], sizes = [8, 32], strides = [1, 1]} : vector<8x128xf32> to vector<8x32xf32>
    %272 = arith.negf %271 : vector<8x32xf32>
    %273 = math.exp %272 : vector<8x32xf32>
    %cst_55 = arith.constant 1.000000e+00 : f32
    %274 = vector.broadcast %cst_55 : f32 to vector<8x32xf32>
    %275 = arith.addf %274, %273 : vector<8x32xf32>
    %276 = arith.divf %274, %275 : vector<8x32xf32>
    %277 = vector.extract_strided_slice %270 {offsets = [0, 32], sizes = [8, 32], strides = [1, 1]} : vector<8x128xf32> to vector<8x32xf32>
    %278 = arith.negf %277 : vector<8x32xf32>
    %279 = math.exp %278 : vector<8x32xf32>
    %cst_56 = arith.constant 1.000000e+00 : f32
    %280 = vector.broadcast %cst_56 : f32 to vector<8x32xf32>
    %281 = arith.addf %280, %279 : vector<8x32xf32>
    %282 = arith.divf %280, %281 : vector<8x32xf32>
    %283 = vector.extract_strided_slice %270 {offsets = [0, 64], sizes = [8, 32], strides = [1, 1]} : vector<8x128xf32> to vector<8x32xf32>
    %284 = math.tanh %283 : vector<8x32xf32>
    %285 = vector.extract_strided_slice %270 {offsets = [0, 96], sizes = [8, 32], strides = [1, 1]} : vector<8x128xf32> to vector<8x32xf32>
    %286 = arith.negf %285 : vector<8x32xf32>
    %287 = math.exp %286 : vector<8x32xf32>
    %cst_57 = arith.constant 1.000000e+00 : f32
    %288 = vector.broadcast %cst_57 : f32 to vector<8x32xf32>
    %289 = arith.addf %288, %287 : vector<8x32xf32>
    %290 = arith.divf %288, %289 : vector<8x32xf32>
    %291 = arith.mulf %282, %265 : vector<8x32xf32>
    %292 = arith.mulf %276, %284 : vector<8x32xf32>
    %293 = arith.addf %291, %292 : vector<8x32xf32>
    %294 = math.tanh %293 : vector<8x32xf32>
    %295 = arith.mulf %290, %294 : vector<8x32xf32>
    %cst_58 = arith.constant dense<0.000000e+00> : vector<8x264xf32>
    %296 = tpu.matmul %295, %1, %cst_58 {dimension_numbers = #tpu.dot_dimension_numbers<[1], [0], [0], [1], [0, 0, 1, 1], [], []>} : vector<8x32xf32>, vector<32x264xf32>, vector<8x264xf32> -> vector<8x264xf32>
    %297 = vector.extract_strided_slice %13 {offsets = [0, 0], sizes = [8, 128], strides = [1, 1]} : vector<64x128xf32> to vector<8x128xf32>
    %298 = vector.extract_strided_slice %296 {offsets = [0, 0], sizes = [8, 128], strides = [1, 1]} : vector<8x264xf32> to vector<8x128xf32>
    %299 = arith.addf %297, %298 : vector<8x128xf32>
    %300 = vector.extract_strided_slice %299 {offsets = [0, 0], sizes = [8, 32], strides = [1, 1]} : vector<8x128xf32> to vector<8x32xf32>
    %301 = arith.negf %300 : vector<8x32xf32>
    %302 = math.exp %301 : vector<8x32xf32>
    %cst_59 = arith.constant 1.000000e+00 : f32
    %303 = vector.broadcast %cst_59 : f32 to vector<8x32xf32>
    %304 = arith.addf %303, %302 : vector<8x32xf32>
    %305 = arith.divf %303, %304 : vector<8x32xf32>
    %306 = vector.extract_strided_slice %299 {offsets = [0, 32], sizes = [8, 32], strides = [1, 1]} : vector<8x128xf32> to vector<8x32xf32>
    %307 = arith.negf %306 : vector<8x32xf32>
    %308 = math.exp %307 : vector<8x32xf32>
    %cst_60 = arith.constant 1.000000e+00 : f32
    %309 = vector.broadcast %cst_60 : f32 to vector<8x32xf32>
    %310 = arith.addf %309, %308 : vector<8x32xf32>
    %311 = arith.divf %309, %310 : vector<8x32xf32>
    %312 = vector.extract_strided_slice %299 {offsets = [0, 64], sizes = [8, 32], strides = [1, 1]} : vector<8x128xf32> to vector<8x32xf32>
    %313 = math.tanh %312 : vector<8x32xf32>
    %314 = vector.extract_strided_slice %299 {offsets = [0, 96], sizes = [8, 32], strides = [1, 1]} : vector<8x128xf32> to vector<8x32xf32>
    %315 = arith.negf %314 : vector<8x32xf32>
    %316 = math.exp %315 : vector<8x32xf32>
    %cst_61 = arith.constant 1.000000e+00 : f32
    %317 = vector.broadcast %cst_61 : f32 to vector<8x32xf32>
    %318 = arith.addf %317, %316 : vector<8x32xf32>
    %319 = arith.divf %317, %318 : vector<8x32xf32>
    %320 = arith.mulf %311, %293 : vector<8x32xf32>
    %321 = arith.mulf %305, %313 : vector<8x32xf32>
    %322 = arith.addf %320, %321 : vector<8x32xf32>
    %323 = math.tanh %322 : vector<8x32xf32>
    %324 = arith.mulf %319, %323 : vector<8x32xf32>
    %cst_62 = arith.constant dense<0.000000e+00> : vector<8x264xf32>
    %325 = tpu.matmul %324, %1, %cst_62 {dimension_numbers = #tpu.dot_dimension_numbers<[1], [0], [0], [1], [0, 0, 1, 1], [], []>} : vector<8x32xf32>, vector<32x264xf32>, vector<8x264xf32> -> vector<8x264xf32>
    %326 = vector.extract_strided_slice %325 {offsets = [0, 256], sizes = [8, 8], strides = [1, 1]} : vector<8x264xf32> to vector<8x8xf32>
    %327 = vector.extract_strided_slice %325 {offsets = [0, 128], sizes = [8, 128], strides = [1, 1]} : vector<8x264xf32> to vector<8x128xf32>
    %328 = arith.addf %327, %16 : vector<8x128xf32>
    %c0_63 = arith.constant 0 : index
    %329 = memref.load %arg1[%c0_63] : memref<8xi32, #tpu.memory_space<smem>>
    %330 = arith.sitofp %329 : i32 to f32
    %331 = vector.extract_strided_slice %13 {offsets = [8, 0], sizes = [8, 128], strides = [1, 1]} : vector<64x128xf32> to vector<8x128xf32>
    %332 = vector.broadcast %330 : f32 to vector<8x128xf32>
    %333 = arith.mulf %332, %331 : vector<8x128xf32>
    %cst_64 = arith.constant 1.000000e+00 : f32
    %334 = arith.subf %cst_64, %330 : f32
    %335 = vector.broadcast %334 : f32 to vector<8x128xf32>
    %336 = arith.mulf %335, %328 : vector<8x128xf32>
    %337 = arith.addf %333, %336 : vector<8x128xf32>
    %338 = vector.extract_strided_slice %325 {offsets = [0, 0], sizes = [8, 128], strides = [1, 1]} : vector<8x264xf32> to vector<8x128xf32>
    %339 = arith.addf %337, %338 : vector<8x128xf32>
    %340 = vector.extract_strided_slice %339 {offsets = [0, 0], sizes = [8, 32], strides = [1, 1]} : vector<8x128xf32> to vector<8x32xf32>
    %341 = arith.negf %340 : vector<8x32xf32>
    %342 = math.exp %341 : vector<8x32xf32>
    %cst_65 = arith.constant 1.000000e+00 : f32
    %343 = vector.broadcast %cst_65 : f32 to vector<8x32xf32>
    %344 = arith.addf %343, %342 : vector<8x32xf32>
    %345 = arith.divf %343, %344 : vector<8x32xf32>
    %346 = vector.extract_strided_slice %339 {offsets = [0, 32], sizes = [8, 32], strides = [1, 1]} : vector<8x128xf32> to vector<8x32xf32>
    %347 = arith.negf %346 : vector<8x32xf32>
    %348 = math.exp %347 : vector<8x32xf32>
    %cst_66 = arith.constant 1.000000e+00 : f32
    %349 = vector.broadcast %cst_66 : f32 to vector<8x32xf32>
    %350 = arith.addf %349, %348 : vector<8x32xf32>
    %351 = arith.divf %349, %350 : vector<8x32xf32>
    %352 = vector.extract_strided_slice %339 {offsets = [0, 64], sizes = [8, 32], strides = [1, 1]} : vector<8x128xf32> to vector<8x32xf32>
    %353 = math.tanh %352 : vector<8x32xf32>
    %354 = vector.extract_strided_slice %339 {offsets = [0, 96], sizes = [8, 32], strides = [1, 1]} : vector<8x128xf32> to vector<8x32xf32>
    %355 = arith.negf %354 : vector<8x32xf32>
    %356 = math.exp %355 : vector<8x32xf32>
    %cst_67 = arith.constant 1.000000e+00 : f32
    %357 = vector.broadcast %cst_67 : f32 to vector<8x32xf32>
    %358 = arith.addf %357, %356 : vector<8x32xf32>
    %359 = arith.divf %357, %358 : vector<8x32xf32>
    %360 = arith.mulf %351, %322 : vector<8x32xf32>
    %361 = arith.mulf %345, %353 : vector<8x32xf32>
    %362 = arith.addf %360, %361 : vector<8x32xf32>
    %363 = math.tanh %362 : vector<8x32xf32>
    %364 = arith.mulf %359, %363 : vector<8x32xf32>
    %cst_68 = arith.constant dense<0.000000e+00> : vector<8x264xf32>
    %365 = tpu.matmul %364, %1, %cst_68 {dimension_numbers = #tpu.dot_dimension_numbers<[1], [0], [0], [1], [0, 0, 1, 1], [], []>} : vector<8x32xf32>, vector<32x264xf32>, vector<8x264xf32> -> vector<8x264xf32>
    %366 = vector.extract_strided_slice %365 {offsets = [0, 256], sizes = [8, 8], strides = [1, 1]} : vector<8x264xf32> to vector<8x8xf32>
    %367 = vector.extract_strided_slice %365 {offsets = [0, 128], sizes = [8, 128], strides = [1, 1]} : vector<8x264xf32> to vector<8x128xf32>
    %368 = arith.addf %367, %16 : vector<8x128xf32>
    %c1 = arith.constant 1 : index
    %369 = memref.load %arg1[%c1] : memref<8xi32, #tpu.memory_space<smem>>
    %370 = arith.sitofp %369 : i32 to f32
    %371 = vector.extract_strided_slice %13 {offsets = [16, 0], sizes = [8, 128], strides = [1, 1]} : vector<64x128xf32> to vector<8x128xf32>
    %372 = vector.broadcast %370 : f32 to vector<8x128xf32>
    %373 = arith.mulf %372, %371 : vector<8x128xf32>
    %cst_69 = arith.constant 1.000000e+00 : f32
    %374 = arith.subf %cst_69, %370 : f32
    %375 = vector.broadcast %374 : f32 to vector<8x128xf32>
    %376 = arith.mulf %375, %368 : vector<8x128xf32>
    %377 = arith.addf %373, %376 : vector<8x128xf32>
    %378 = vector.extract_strided_slice %365 {offsets = [0, 0], sizes = [8, 128], strides = [1, 1]} : vector<8x264xf32> to vector<8x128xf32>
    %379 = arith.addf %377, %378 : vector<8x128xf32>
    %380 = vector.extract_strided_slice %379 {offsets = [0, 0], sizes = [8, 32], strides = [1, 1]} : vector<8x128xf32> to vector<8x32xf32>
    %381 = arith.negf %380 : vector<8x32xf32>
    %382 = math.exp %381 : vector<8x32xf32>
    %cst_70 = arith.constant 1.000000e+00 : f32
    %383 = vector.broadcast %cst_70 : f32 to vector<8x32xf32>
    %384 = arith.addf %383, %382 : vector<8x32xf32>
    %385 = arith.divf %383, %384 : vector<8x32xf32>
    %386 = vector.extract_strided_slice %379 {offsets = [0, 32], sizes = [8, 32], strides = [1, 1]} : vector<8x128xf32> to vector<8x32xf32>
    %387 = arith.negf %386 : vector<8x32xf32>
    %388 = math.exp %387 : vector<8x32xf32>
    %cst_71 = arith.constant 1.000000e+00 : f32
    %389 = vector.broadcast %cst_71 : f32 to vector<8x32xf32>
    %390 = arith.addf %389, %388 : vector<8x32xf32>
    %391 = arith.divf %389, %390 : vector<8x32xf32>
    %392 = vector.extract_strided_slice %379 {offsets = [0, 64], sizes = [8, 32], strides = [1, 1]} : vector<8x128xf32> to vector<8x32xf32>
    %393 = math.tanh %392 : vector<8x32xf32>
    %394 = vector.extract_strided_slice %379 {offsets = [0, 96], sizes = [8, 32], strides = [1, 1]} : vector<8x128xf32> to vector<8x32xf32>
    %395 = arith.negf %394 : vector<8x32xf32>
    %396 = math.exp %395 : vector<8x32xf32>
    %cst_72 = arith.constant 1.000000e+00 : f32
    %397 = vector.broadcast %cst_72 : f32 to vector<8x32xf32>
    %398 = arith.addf %397, %396 : vector<8x32xf32>
    %399 = arith.divf %397, %398 : vector<8x32xf32>
    %400 = arith.mulf %391, %362 : vector<8x32xf32>
    %401 = arith.mulf %385, %393 : vector<8x32xf32>
    %402 = arith.addf %400, %401 : vector<8x32xf32>
    %403 = math.tanh %402 : vector<8x32xf32>
    %404 = arith.mulf %399, %403 : vector<8x32xf32>
    %cst_73 = arith.constant dense<0.000000e+00> : vector<8x264xf32>
    %405 = tpu.matmul %404, %1, %cst_73 {dimension_numbers = #tpu.dot_dimension_numbers<[1], [0], [0], [1], [0, 0, 1, 1], [], []>} : vector<8x32xf32>, vector<32x264xf32>, vector<8x264xf32> -> vector<8x264xf32>
    %406 = vector.extract_strided_slice %405 {offsets = [0, 256], sizes = [8, 8], strides = [1, 1]} : vector<8x264xf32> to vector<8x8xf32>
    %407 = vector.extract_strided_slice %405 {offsets = [0, 128], sizes = [8, 128], strides = [1, 1]} : vector<8x264xf32> to vector<8x128xf32>
    %408 = arith.addf %407, %16 : vector<8x128xf32>
    %c2 = arith.constant 2 : index
    %409 = memref.load %arg1[%c2] : memref<8xi32, #tpu.memory_space<smem>>
    %410 = arith.sitofp %409 : i32 to f32
    %411 = vector.extract_strided_slice %13 {offsets = [24, 0], sizes = [8, 128], strides = [1, 1]} : vector<64x128xf32> to vector<8x128xf32>
    %412 = vector.broadcast %410 : f32 to vector<8x128xf32>
    %413 = arith.mulf %412, %411 : vector<8x128xf32>
    %cst_74 = arith.constant 1.000000e+00 : f32
    %414 = arith.subf %cst_74, %410 : f32
    %415 = vector.broadcast %414 : f32 to vector<8x128xf32>
    %416 = arith.mulf %415, %408 : vector<8x128xf32>
    %417 = arith.addf %413, %416 : vector<8x128xf32>
    %418 = vector.extract_strided_slice %405 {offsets = [0, 0], sizes = [8, 128], strides = [1, 1]} : vector<8x264xf32> to vector<8x128xf32>
    %419 = arith.addf %417, %418 : vector<8x128xf32>
    %420 = vector.extract_strided_slice %419 {offsets = [0, 0], sizes = [8, 32], strides = [1, 1]} : vector<8x128xf32> to vector<8x32xf32>
    %421 = arith.negf %420 : vector<8x32xf32>
    %422 = math.exp %421 : vector<8x32xf32>
    %cst_75 = arith.constant 1.000000e+00 : f32
    %423 = vector.broadcast %cst_75 : f32 to vector<8x32xf32>
    %424 = arith.addf %423, %422 : vector<8x32xf32>
    %425 = arith.divf %423, %424 : vector<8x32xf32>
    %426 = vector.extract_strided_slice %419 {offsets = [0, 32], sizes = [8, 32], strides = [1, 1]} : vector<8x128xf32> to vector<8x32xf32>
    %427 = arith.negf %426 : vector<8x32xf32>
    %428 = math.exp %427 : vector<8x32xf32>
    %cst_76 = arith.constant 1.000000e+00 : f32
    %429 = vector.broadcast %cst_76 : f32 to vector<8x32xf32>
    %430 = arith.addf %429, %428 : vector<8x32xf32>
    %431 = arith.divf %429, %430 : vector<8x32xf32>
    %432 = vector.extract_strided_slice %419 {offsets = [0, 64], sizes = [8, 32], strides = [1, 1]} : vector<8x128xf32> to vector<8x32xf32>
    %433 = math.tanh %432 : vector<8x32xf32>
    %434 = vector.extract_strided_slice %419 {offsets = [0, 96], sizes = [8, 32], strides = [1, 1]} : vector<8x128xf32> to vector<8x32xf32>
    %435 = arith.negf %434 : vector<8x32xf32>
    %436 = math.exp %435 : vector<8x32xf32>
    %cst_77 = arith.constant 1.000000e+00 : f32
    %437 = vector.broadcast %cst_77 : f32 to vector<8x32xf32>
    %438 = arith.addf %437, %436 : vector<8x32xf32>
    %439 = arith.divf %437, %438 : vector<8x32xf32>
    %440 = arith.mulf %431, %402 : vector<8x32xf32>
    %441 = arith.mulf %425, %433 : vector<8x32xf32>
    %442 = arith.addf %440, %441 : vector<8x32xf32>
    %443 = math.tanh %442 : vector<8x32xf32>
    %444 = arith.mulf %439, %443 : vector<8x32xf32>
    %cst_78 = arith.constant dense<0.000000e+00> : vector<8x264xf32>
    %445 = tpu.matmul %444, %1, %cst_78 {dimension_numbers = #tpu.dot_dimension_numbers<[1], [0], [0], [1], [0, 0, 1, 1], [], []>} : vector<8x32xf32>, vector<32x264xf32>, vector<8x264xf32> -> vector<8x264xf32>
    %446 = vector.extract_strided_slice %445 {offsets = [0, 256], sizes = [8, 8], strides = [1, 1]} : vector<8x264xf32> to vector<8x8xf32>
    %447 = vector.extract_strided_slice %445 {offsets = [0, 128], sizes = [8, 128], strides = [1, 1]} : vector<8x264xf32> to vector<8x128xf32>
    %448 = arith.addf %447, %16 : vector<8x128xf32>
    %c3 = arith.constant 3 : index
    %449 = memref.load %arg1[%c3] : memref<8xi32, #tpu.memory_space<smem>>
    %450 = arith.sitofp %449 : i32 to f32
    %451 = vector.extract_strided_slice %13 {offsets = [32, 0], sizes = [8, 128], strides = [1, 1]} : vector<64x128xf32> to vector<8x128xf32>
    %452 = vector.broadcast %450 : f32 to vector<8x128xf32>
    %453 = arith.mulf %452, %451 : vector<8x128xf32>
    %cst_79 = arith.constant 1.000000e+00 : f32
    %454 = arith.subf %cst_79, %450 : f32
    %455 = vector.broadcast %454 : f32 to vector<8x128xf32>
    %456 = arith.mulf %455, %448 : vector<8x128xf32>
    %457 = arith.addf %453, %456 : vector<8x128xf32>
    %458 = vector.extract_strided_slice %445 {offsets = [0, 0], sizes = [8, 128], strides = [1, 1]} : vector<8x264xf32> to vector<8x128xf32>
    %459 = arith.addf %457, %458 : vector<8x128xf32>
    %460 = vector.extract_strided_slice %459 {offsets = [0, 0], sizes = [8, 32], strides = [1, 1]} : vector<8x128xf32> to vector<8x32xf32>
    %461 = arith.negf %460 : vector<8x32xf32>
    %462 = math.exp %461 : vector<8x32xf32>
    %cst_80 = arith.constant 1.000000e+00 : f32
    %463 = vector.broadcast %cst_80 : f32 to vector<8x32xf32>
    %464 = arith.addf %463, %462 : vector<8x32xf32>
    %465 = arith.divf %463, %464 : vector<8x32xf32>
    %466 = vector.extract_strided_slice %459 {offsets = [0, 32], sizes = [8, 32], strides = [1, 1]} : vector<8x128xf32> to vector<8x32xf32>
    %467 = arith.negf %466 : vector<8x32xf32>
    %468 = math.exp %467 : vector<8x32xf32>
    %cst_81 = arith.constant 1.000000e+00 : f32
    %469 = vector.broadcast %cst_81 : f32 to vector<8x32xf32>
    %470 = arith.addf %469, %468 : vector<8x32xf32>
    %471 = arith.divf %469, %470 : vector<8x32xf32>
    %472 = vector.extract_strided_slice %459 {offsets = [0, 64], sizes = [8, 32], strides = [1, 1]} : vector<8x128xf32> to vector<8x32xf32>
    %473 = math.tanh %472 : vector<8x32xf32>
    %474 = vector.extract_strided_slice %459 {offsets = [0, 96], sizes = [8, 32], strides = [1, 1]} : vector<8x128xf32> to vector<8x32xf32>
    %475 = arith.negf %474 : vector<8x32xf32>
    %476 = math.exp %475 : vector<8x32xf32>
    %cst_82 = arith.constant 1.000000e+00 : f32
    %477 = vector.broadcast %cst_82 : f32 to vector<8x32xf32>
    %478 = arith.addf %477, %476 : vector<8x32xf32>
    %479 = arith.divf %477, %478 : vector<8x32xf32>
    %480 = arith.mulf %471, %442 : vector<8x32xf32>
    %481 = arith.mulf %465, %473 : vector<8x32xf32>
    %482 = arith.addf %480, %481 : vector<8x32xf32>
    %483 = math.tanh %482 : vector<8x32xf32>
    %484 = arith.mulf %479, %483 : vector<8x32xf32>
    %cst_83 = arith.constant dense<0.000000e+00> : vector<8x264xf32>
    %485 = tpu.matmul %484, %1, %cst_83 {dimension_numbers = #tpu.dot_dimension_numbers<[1], [0], [0], [1], [0, 0, 1, 1], [], []>} : vector<8x32xf32>, vector<32x264xf32>, vector<8x264xf32> -> vector<8x264xf32>
    %486 = vector.extract_strided_slice %485 {offsets = [0, 256], sizes = [8, 8], strides = [1, 1]} : vector<8x264xf32> to vector<8x8xf32>
    %487 = vector.extract_strided_slice %485 {offsets = [0, 128], sizes = [8, 128], strides = [1, 1]} : vector<8x264xf32> to vector<8x128xf32>
    %488 = arith.addf %487, %16 : vector<8x128xf32>
    %c4 = arith.constant 4 : index
    %489 = memref.load %arg1[%c4] : memref<8xi32, #tpu.memory_space<smem>>
    %490 = arith.sitofp %489 : i32 to f32
    %491 = vector.extract_strided_slice %13 {offsets = [40, 0], sizes = [8, 128], strides = [1, 1]} : vector<64x128xf32> to vector<8x128xf32>
    %492 = vector.broadcast %490 : f32 to vector<8x128xf32>
    %493 = arith.mulf %492, %491 : vector<8x128xf32>
    %cst_84 = arith.constant 1.000000e+00 : f32
    %494 = arith.subf %cst_84, %490 : f32
    %495 = vector.broadcast %494 : f32 to vector<8x128xf32>
    %496 = arith.mulf %495, %488 : vector<8x128xf32>
    %497 = arith.addf %493, %496 : vector<8x128xf32>
    %498 = vector.extract_strided_slice %485 {offsets = [0, 0], sizes = [8, 128], strides = [1, 1]} : vector<8x264xf32> to vector<8x128xf32>
    %499 = arith.addf %497, %498 : vector<8x128xf32>
    %500 = vector.extract_strided_slice %499 {offsets = [0, 0], sizes = [8, 32], strides = [1, 1]} : vector<8x128xf32> to vector<8x32xf32>
    %501 = arith.negf %500 : vector<8x32xf32>
    %502 = math.exp %501 : vector<8x32xf32>
    %cst_85 = arith.constant 1.000000e+00 : f32
    %503 = vector.broadcast %cst_85 : f32 to vector<8x32xf32>
    %504 = arith.addf %503, %502 : vector<8x32xf32>
    %505 = arith.divf %503, %504 : vector<8x32xf32>
    %506 = vector.extract_strided_slice %499 {offsets = [0, 32], sizes = [8, 32], strides = [1, 1]} : vector<8x128xf32> to vector<8x32xf32>
    %507 = arith.negf %506 : vector<8x32xf32>
    %508 = math.exp %507 : vector<8x32xf32>
    %cst_86 = arith.constant 1.000000e+00 : f32
    %509 = vector.broadcast %cst_86 : f32 to vector<8x32xf32>
    %510 = arith.addf %509, %508 : vector<8x32xf32>
    %511 = arith.divf %509, %510 : vector<8x32xf32>
    %512 = vector.extract_strided_slice %499 {offsets = [0, 64], sizes = [8, 32], strides = [1, 1]} : vector<8x128xf32> to vector<8x32xf32>
    %513 = math.tanh %512 : vector<8x32xf32>
    %514 = vector.extract_strided_slice %499 {offsets = [0, 96], sizes = [8, 32], strides = [1, 1]} : vector<8x128xf32> to vector<8x32xf32>
    %515 = arith.negf %514 : vector<8x32xf32>
    %516 = math.exp %515 : vector<8x32xf32>
    %cst_87 = arith.constant 1.000000e+00 : f32
    %517 = vector.broadcast %cst_87 : f32 to vector<8x32xf32>
    %518 = arith.addf %517, %516 : vector<8x32xf32>
    %519 = arith.divf %517, %518 : vector<8x32xf32>
    %520 = arith.mulf %511, %482 : vector<8x32xf32>
    %521 = arith.mulf %505, %513 : vector<8x32xf32>
    %522 = arith.addf %520, %521 : vector<8x32xf32>
    %523 = math.tanh %522 : vector<8x32xf32>
    %524 = arith.mulf %519, %523 : vector<8x32xf32>
    %cst_88 = arith.constant dense<0.000000e+00> : vector<8x264xf32>
    %525 = tpu.matmul %524, %1, %cst_88 {dimension_numbers = #tpu.dot_dimension_numbers<[1], [0], [0], [1], [0, 0, 1, 1], [], []>} : vector<8x32xf32>, vector<32x264xf32>, vector<8x264xf32> -> vector<8x264xf32>
    %526 = vector.extract_strided_slice %525 {offsets = [0, 256], sizes = [8, 8], strides = [1, 1]} : vector<8x264xf32> to vector<8x8xf32>
    %527 = vector.extract_strided_slice %525 {offsets = [0, 128], sizes = [8, 128], strides = [1, 1]} : vector<8x264xf32> to vector<8x128xf32>
    %528 = arith.addf %527, %16 : vector<8x128xf32>
    %c5 = arith.constant 5 : index
    %529 = memref.load %arg1[%c5] : memref<8xi32, #tpu.memory_space<smem>>
    %530 = arith.sitofp %529 : i32 to f32
    %531 = vector.extract_strided_slice %13 {offsets = [48, 0], sizes = [8, 128], strides = [1, 1]} : vector<64x128xf32> to vector<8x128xf32>
    %532 = vector.broadcast %530 : f32 to vector<8x128xf32>
    %533 = arith.mulf %532, %531 : vector<8x128xf32>
    %cst_89 = arith.constant 1.000000e+00 : f32
    %534 = arith.subf %cst_89, %530 : f32
    %535 = vector.broadcast %534 : f32 to vector<8x128xf32>
    %536 = arith.mulf %535, %528 : vector<8x128xf32>
    %537 = arith.addf %533, %536 : vector<8x128xf32>
    %538 = vector.extract_strided_slice %525 {offsets = [0, 0], sizes = [8, 128], strides = [1, 1]} : vector<8x264xf32> to vector<8x128xf32>
    %539 = arith.addf %537, %538 : vector<8x128xf32>
    %540 = vector.extract_strided_slice %539 {offsets = [0, 0], sizes = [8, 32], strides = [1, 1]} : vector<8x128xf32> to vector<8x32xf32>
    %541 = arith.negf %540 : vector<8x32xf32>
    %542 = math.exp %541 : vector<8x32xf32>
    %cst_90 = arith.constant 1.000000e+00 : f32
    %543 = vector.broadcast %cst_90 : f32 to vector<8x32xf32>
    %544 = arith.addf %543, %542 : vector<8x32xf32>
    %545 = arith.divf %543, %544 : vector<8x32xf32>
    %546 = vector.extract_strided_slice %539 {offsets = [0, 32], sizes = [8, 32], strides = [1, 1]} : vector<8x128xf32> to vector<8x32xf32>
    %547 = arith.negf %546 : vector<8x32xf32>
    %548 = math.exp %547 : vector<8x32xf32>
    %cst_91 = arith.constant 1.000000e+00 : f32
    %549 = vector.broadcast %cst_91 : f32 to vector<8x32xf32>
    %550 = arith.addf %549, %548 : vector<8x32xf32>
    %551 = arith.divf %549, %550 : vector<8x32xf32>
    %552 = vector.extract_strided_slice %539 {offsets = [0, 64], sizes = [8, 32], strides = [1, 1]} : vector<8x128xf32> to vector<8x32xf32>
    %553 = math.tanh %552 : vector<8x32xf32>
    %554 = vector.extract_strided_slice %539 {offsets = [0, 96], sizes = [8, 32], strides = [1, 1]} : vector<8x128xf32> to vector<8x32xf32>
    %555 = arith.negf %554 : vector<8x32xf32>
    %556 = math.exp %555 : vector<8x32xf32>
    %cst_92 = arith.constant 1.000000e+00 : f32
    %557 = vector.broadcast %cst_92 : f32 to vector<8x32xf32>
    %558 = arith.addf %557, %556 : vector<8x32xf32>
    %559 = arith.divf %557, %558 : vector<8x32xf32>
    %560 = arith.mulf %551, %522 : vector<8x32xf32>
    %561 = arith.mulf %545, %553 : vector<8x32xf32>
    %562 = arith.addf %560, %561 : vector<8x32xf32>
    %563 = math.tanh %562 : vector<8x32xf32>
    %564 = arith.mulf %559, %563 : vector<8x32xf32>
    %cst_93 = arith.constant dense<0.000000e+00> : vector<8x264xf32>
    %565 = tpu.matmul %564, %1, %cst_93 {dimension_numbers = #tpu.dot_dimension_numbers<[1], [0], [0], [1], [0, 0, 1, 1], [], []>} : vector<8x32xf32>, vector<32x264xf32>, vector<8x264xf32> -> vector<8x264xf32>
    %566 = vector.extract_strided_slice %565 {offsets = [0, 256], sizes = [8, 8], strides = [1, 1]} : vector<8x264xf32> to vector<8x8xf32>
    %567 = vector.extract_strided_slice %565 {offsets = [0, 128], sizes = [8, 128], strides = [1, 1]} : vector<8x264xf32> to vector<8x128xf32>
    %568 = arith.addf %567, %16 : vector<8x128xf32>
    %c6 = arith.constant 6 : index
    %569 = memref.load %arg1[%c6] : memref<8xi32, #tpu.memory_space<smem>>
    %570 = arith.sitofp %569 : i32 to f32
    %571 = vector.extract_strided_slice %13 {offsets = [56, 0], sizes = [8, 128], strides = [1, 1]} : vector<64x128xf32> to vector<8x128xf32>
    %572 = vector.broadcast %570 : f32 to vector<8x128xf32>
    %573 = arith.mulf %572, %571 : vector<8x128xf32>
    %cst_94 = arith.constant 1.000000e+00 : f32
    %574 = arith.subf %cst_94, %570 : f32
    %575 = vector.broadcast %574 : f32 to vector<8x128xf32>
    %576 = arith.mulf %575, %568 : vector<8x128xf32>
    %577 = arith.addf %573, %576 : vector<8x128xf32>
    %578 = vector.extract_strided_slice %565 {offsets = [0, 0], sizes = [8, 128], strides = [1, 1]} : vector<8x264xf32> to vector<8x128xf32>
    %579 = arith.addf %577, %578 : vector<8x128xf32>
    %580 = vector.extract_strided_slice %579 {offsets = [0, 0], sizes = [8, 32], strides = [1, 1]} : vector<8x128xf32> to vector<8x32xf32>
    %581 = arith.negf %580 : vector<8x32xf32>
    %582 = math.exp %581 : vector<8x32xf32>
    %cst_95 = arith.constant 1.000000e+00 : f32
    %583 = vector.broadcast %cst_95 : f32 to vector<8x32xf32>
    %584 = arith.addf %583, %582 : vector<8x32xf32>
    %585 = arith.divf %583, %584 : vector<8x32xf32>
    %586 = vector.extract_strided_slice %579 {offsets = [0, 32], sizes = [8, 32], strides = [1, 1]} : vector<8x128xf32> to vector<8x32xf32>
    %587 = arith.negf %586 : vector<8x32xf32>
    %588 = math.exp %587 : vector<8x32xf32>
    %cst_96 = arith.constant 1.000000e+00 : f32
    %589 = vector.broadcast %cst_96 : f32 to vector<8x32xf32>
    %590 = arith.addf %589, %588 : vector<8x32xf32>
    %591 = arith.divf %589, %590 : vector<8x32xf32>
    %592 = vector.extract_strided_slice %579 {offsets = [0, 64], sizes = [8, 32], strides = [1, 1]} : vector<8x128xf32> to vector<8x32xf32>
    %593 = math.tanh %592 : vector<8x32xf32>
    %594 = vector.extract_strided_slice %579 {offsets = [0, 96], sizes = [8, 32], strides = [1, 1]} : vector<8x128xf32> to vector<8x32xf32>
    %595 = arith.negf %594 : vector<8x32xf32>
    %596 = math.exp %595 : vector<8x32xf32>
    %cst_97 = arith.constant 1.000000e+00 : f32
    %597 = vector.broadcast %cst_97 : f32 to vector<8x32xf32>
    %598 = arith.addf %597, %596 : vector<8x32xf32>
    %599 = arith.divf %597, %598 : vector<8x32xf32>
    %600 = arith.mulf %591, %562 : vector<8x32xf32>
    %601 = arith.mulf %585, %593 : vector<8x32xf32>
    %602 = arith.addf %600, %601 : vector<8x32xf32>
    %603 = math.tanh %602 : vector<8x32xf32>
    %604 = arith.mulf %599, %603 : vector<8x32xf32>
    %cst_98 = arith.constant dense<0.000000e+00> : vector<8x264xf32>
    %605 = tpu.matmul %604, %1, %cst_98 {dimension_numbers = #tpu.dot_dimension_numbers<[1], [0], [0], [1], [0, 0, 1, 1], [], []>} : vector<8x32xf32>, vector<32x264xf32>, vector<8x264xf32> -> vector<8x264xf32>
    %606 = vector.extract_strided_slice %605 {offsets = [0, 256], sizes = [8, 8], strides = [1, 1]} : vector<8x264xf32> to vector<8x8xf32>
    %607 = tpu.concatenate %326, %366, %406, %446, %486, %526, %566, %606 in 0 : vector<8x8xf32>, vector<8x8xf32>, vector<8x8xf32>, vector<8x8xf32>, vector<8x8xf32>, vector<8x8xf32>, vector<8x8xf32>, vector<8x8xf32> -> vector<64x8xf32>
    %c0_99 = arith.constant 0 : index
    %c0_100 = arith.constant 0 : index
    %608 = vector.load %arg11[%c0_99, %c0_100] : memref<1x8xf32, #tpu.memory_space<vmem>>, vector<1x8xf32>
    %609 = vector.broadcast %608 : vector<1x8xf32> to vector<64x8xf32>
    %610 = arith.addf %607, %609 : vector<64x8xf32>
    %c0_101 = arith.constant 0 : index
    %c0_102 = arith.constant 0 : index
    %611 = vector.load %arg12[%c0_101, %c0_102] : memref<64x8xf32, #tpu.memory_space<vmem>>, vector<64x8xf32>
    tpu.vector_store %arg12[%c0_101, %c0_102], %610 {strides = array<i32>} : memref<64x8xf32, #tpu.memory_space<vmem>>, vector<64x8xf32>,
    return
  }
  func.func @transform_0(%arg0: i32, %arg1: memref<8xi32, #tpu.memory_space<smem>>) -> (i32, i32) {
    %c0_i32 = arith.constant 0 : i32
    %c0_i32_0 = arith.constant 0 : i32
    %c0_i32_1 = arith.constant 0 : i32
    return %c0_i32, %c0_i32_0 : i32, i32
  }
  func.func @transform_1(%arg0: i32, %arg1: memref<8xi32, #tpu.memory_space<smem>>) -> (i32, i32) {
    %c0_i32 = arith.constant 0 : i32
    %c0_i32_0 = arith.constant 0 : i32
    %c0_i32_1 = arith.constant 0 : i32
    return %c0_i32, %c0_i32_0 : i32, i32
  }
  func.func @transform_2(%arg0: i32, %arg1: memref<8xi32, #tpu.memory_space<smem>>) -> (i32, i32) {
    %c0_i32 = arith.constant 0 : i32
    %c0_i32_0 = arith.constant 0 : i32
    %c0_i32_1 = arith.constant 0 : i32
    return %c0_i32, %c0_i32_0 : i32, i32
  }
  func.func @transform_3(%arg0: i32, %arg1: memref<8xi32, #tpu.memory_space<smem>>) -> (i32, i32) {
    %c0_i32 = arith.constant 0 : i32
    %c0_i32_0 = arith.constant 0 : i32
    %c0_i32_1 = arith.constant 0 : i32
    return %c0_i32, %c0_i32_0 : i32, i32
  }
  func.func @transform_4(%arg0: i32, %arg1: memref<8xi32, #tpu.memory_space<smem>>) -> (i32, i32) {
    %c0_i32 = arith.constant 0 : i32
    %c0_i32_0 = arith.constant 0 : i32
    %c0_i32_1 = arith.constant 0 : i32
    return %c0_i32, %c0_i32_0 : i32, i32
  }
  func.func @transform_5(%arg0: i32, %arg1: memref<8xi32, #tpu.memory_space<smem>>) -> (i32, i32) {
    %c0_i32 = arith.constant 0 : i32
    %c0_i32_0 = arith.constant 0 : i32
    %c0_i32_1 = arith.constant 0 : i32
    return %c0_i32, %c0_i32_0 : i32, i32
  }
  func.func @transform_6(%arg0: i32, %arg1: memref<8xi32, #tpu.memory_space<smem>>) -> (i32, i32) {
    %c0_i32 = arith.constant 0 : i32
    %c0_i32_0 = arith.constant 0 : i32
    %c0_i32_1 = arith.constant 0 : i32
    return %c0_i32, %c0_i32_0 : i32, i32
  }
  func.func @transform_7(%arg0: i32, %arg1: memref<8xi32, #tpu.memory_space<smem>>) -> (i32, i32) {
    %c0_i32 = arith.constant 0 : i32
    %c0_i32_0 = arith.constant 0 : i32
    %c0_i32_1 = arith.constant 0 : i32
    return %c0_i32, %c0_i32_0 : i32, i32
  }
  func.func @transform_8(%arg0: i32, %arg1: memref<8xi32, #tpu.memory_space<smem>>) -> (i32, i32) {
    %c0_i32 = arith.constant 0 : i32
    %c0_i32_0 = arith.constant 0 : i32
    %c0_i32_1 = arith.constant 0 : i32
    return %c0_i32, %c0_i32_0 : i32, i32
  }
  func.func @transform_9(%arg0: i32, %arg1: memref<8xi32, #tpu.memory_space<smem>>) -> (i32, i32) {
    %c0_i32 = arith.constant 0 : i32
    %c0_i32_0 = arith.constant 0 : i32
    %c0_i32_1 = arith.constant 0 : i32
    return %c0_i32, %c0_i32_0 : i32, i32
  }
  func.func @transform_10(%arg0: i32, %arg1: memref<8xi32, #tpu.memory_space<smem>>) -> (i32, i32) {
    %c0_i32 = arith.constant 0 : i32
    %c0_i32_0 = arith.constant 0 : i32
    %c0_i32_1 = arith.constant 0 : i32
    return %c0_i32, %c0_i32_0 : i32, i32
  }
}

</mosaic_0001>

<llo_original>
// kernel: tpu_custom_call.1
$region0: #{tpu_custom_call.1}
  #allocation0 [shape = 'u32[]', space=smem, size = 0x4, offset = 0x4, fixed_abs, tag = 'smem constant byte address 0x4 - core index']
  #allocation1 [shape = 'u32[72,128]{1,0:T(1,128)}', space=vmem, size = 0x9000, scoped, tag = 'internal scratch']
  #allocation2 [shape = 's32[1]{0}', space=sflag, size = 0x4, scoped, tag = 'scoped memory for tpu_custom_call.1']
  #allocation3 [shape = 'u8[512]{0}', space=smem, size = 0x200, scoped, tag = 'prefetched SMEM operand 0']
  %s0 = inlined_call_operand.vmem [shape: s32[8], index: 0, kind: input, shape index: {}]
  %s1 = inlined_call_operand.vmem [shape: f32[80,8], index: 1, kind: input, shape index: {}]
  %s2 = inlined_call_operand.vmem [shape: f32[64,8], index: 2, kind: input, shape index: {}]
  %s3 = inlined_call_operand.vmem [shape: f32[8,128], index: 3, kind: input, shape index: {}]
  %s4 = inlined_call_operand.vmem [shape: f32[32,128], index: 4, kind: input, shape index: {}]
  %s5 = inlined_call_operand.vmem [shape: f32[1,128], index: 5, kind: input, shape index: {}]
  %s6 = inlined_call_operand.vmem [shape: f32[8,128], index: 6, kind: input, shape index: {}]
  %s7 = inlined_call_operand.vmem [shape: f32[1,128], index: 7, kind: input, shape index: {}]
  %s8 = inlined_call_operand.vmem [shape: f32[32,264], index: 8, kind: input, shape index: {}]
  %s9 = inlined_call_operand.vmem [shape: f32[1,128], index: 9, kind: input, shape index: {}]
  %s10 = inlined_call_operand.vmem [shape: f32[1,8], index: 10, kind: input, shape index: {}]
  %s11 = inlined_call_operand.vmem [shape: f32[64,8], index: 11, kind: output, shape index: {}]
  %s12 = sld [smem:[#allocation0]]
  $region50: #{tpu_custom_call.1} parent=0
    _
  %s14 = ssub.s32 1, %s12
  %s15 = scalar_select 0, %s14, %s12
  %s17 = sshll.u32 %s0, 4
  %s18 = int_to_ptr.vmem [resolvable:$true] %s17
  %20 = dma.vmem_to_smem %s18, 16, [#allocation3], [#allocation2]
  %22 = dma.done [#allocation2], 16
  %23 = sfence
  // Predicated region
  $region2: #{tpu_custom_call.1} parent=0 // pred_check
    _
  $region3: #{tpu_custom_call.1} parent=0 // pred_check_branch
    %25 = sbr.rel (0) target = $region5
  $region4: #{tpu_custom_call.1} parent=0 // pred_region
    _
  $region5: #{tpu_custom_call.1} parent=0 // pred_fallthru
    _
  // Predicated region
  $region6: #{tpu_custom_call.1} parent=0 // pred_check
    _
  $region7: #{tpu_custom_call.1} parent=0 // pred_check_branch
    %27 = sbr.rel (0) target = $region9
  $region8: #{tpu_custom_call.1} parent=0 // pred_region
    _
  $region9: #{tpu_custom_call.1} parent=0 // pred_fallthru
    _
  // Predicated region
  $region10: #{tpu_custom_call.1} parent=0 // pred_check
    _
  $region11: #{tpu_custom_call.1} parent=0 // pred_check_branch
    %29 = sbr.rel (0) target = $region13
  $region12: #{tpu_custom_call.1} parent=0 // pred_region
    _
  $region13: #{tpu_custom_call.1} parent=0 // pred_fallthru
    _
  // Predicated region
  $region14: #{tpu_custom_call.1} parent=0 // pred_check
    _
  $region15: #{tpu_custom_call.1} parent=0 // pred_check_branch
    %31 = sbr.rel (0) target = $region17
  $region16: #{tpu_custom_call.1} parent=0 // pred_region
    _
  $region17: #{tpu_custom_call.1} parent=0 // pred_fallthru
    _
  // Predicated region
  $region18: #{tpu_custom_call.1} parent=0 // pred_check
    _
  $region19: #{tpu_custom_call.1} parent=0 // pred_check_branch
    %33 = sbr.rel (0) target = $region21
  $region20: #{tpu_custom_call.1} parent=0 // pred_region
    _
  $region21: #{tpu_custom_call.1} parent=0 // pred_fallthru
    _
  // Predicated region
  $region22: #{tpu_custom_call.1} parent=0 // pred_check
    _
  $region23: #{tpu_custom_call.1} parent=0 // pred_check_branch
    %35 = sbr.rel (0) target = $region25
  $region24: #{tpu_custom_call.1} parent=0 // pred_region
    _
  $region25: #{tpu_custom_call.1} parent=0 // pred_fallthru
    _
  // Predicated region
  $region26: #{tpu_custom_call.1} parent=0 // pred_check
    _
  $region27: #{tpu_custom_call.1} parent=0 // pred_check_branch
    %37 = sbr.rel (0) target = $region29
  $region28: #{tpu_custom_call.1} parent=0 // pred_region
    _
  $region29: #{tpu_custom_call.1} parent=0 // pred_fallthru
    _
  // Predicated region
  $region30: #{tpu_custom_call.1} parent=0 // pred_check
    _
  $region31: #{tpu_custom_call.1} parent=0 // pred_check_branch
    %39 = sbr.rel (0) target = $region33
  $region32: #{tpu_custom_call.1} parent=0 // pred_region
    _
  $region33: #{tpu_custom_call.1} parent=0 // pred_fallthru
    _
  // Predicated region
  $region34: #{tpu_custom_call.1} parent=0 // pred_check
    _
  $region35: #{tpu_custom_call.1} parent=0 // pred_check_branch
    %41 = sbr.rel (0) target = $region37
  $region36: #{tpu_custom_call.1} parent=0 // pred_region
    _
  $region37: #{tpu_custom_call.1} parent=0 // pred_fallthru
    _
  // Predicated region
  $region38: #{tpu_custom_call.1} parent=0 // pred_check
    _
  $region39: #{tpu_custom_call.1} parent=0 // pred_check_branch
    %43 = sbr.rel (0) target = $region41
  $region40: #{tpu_custom_call.1} parent=0 // pred_region
    _
  $region41: #{tpu_custom_call.1} parent=0 // pred_fallthru
    _
  %v44 = vld [vmem:[%s4] sm:$0xff]
  %v45 = vld [vmem:[%s4 + $0x8] sm:$0xff]
  %v46 = vld [vmem:[%s4 + $0x10] sm:$0xff]
  %v47 = vld [vmem:[%s4 + $0x18] sm:$0xff]
  %v48 = vld [vmem:[%s8] sm:$0xff]
  %v49 = vld [vmem:[%s8 + $0x8] sm:$0xff]
  %v50 = vld [vmem:[%s8 + $0x10] sm:$0xff]
  %v51 = vld [vmem:[%s8 + $0x18] sm:$0xff]
  %v52 = vld [vmem:[%s8 + $0x20] sm:$0xff]
  %v53 = vld [vmem:[%s8 + $0x28] sm:$0xff]
  %v54 = vld [vmem:[%s8 + $0x30] sm:$0xff]
  %v55 = vld [vmem:[%s8 + $0x38] sm:$0xff]
  %v56 = vld [vmem:[%s8 + $0x40] sm:$0xff]
  %v57 = vld [vmem:[%s8 + $0x48] sm:$0xff]
  %v58 = vld [vmem:[%s8 + $0x50] sm:$0xff]
  %v59 = vld [vmem:[%s8 + $0x58] sm:$0xff]
  %v60 = vld [vmem:[%s1] sm:$0xff]
  %v61 = vld [vmem:[%s1 + $0x8] sm:$0xff]
  %v62 = vld [vmem:[%s1 + $0x10] sm:$0xff]
  %v63 = vld [vmem:[%s1 + $0x18] sm:$0xff]
  %v64 = vld [vmem:[%s1 + $0x20] sm:$0xff]
  %v65 = vld [vmem:[%s1 + $0x28] sm:$0xff]
  %v66 = vld [vmem:[%s1 + $0x30] sm:$0xff]
  %v67 = vld [vmem:[%s1 + $0x38] sm:$0xff]
  %v68 = vld [vmem:[%s1 + $0x40] sm:$0xff]
  %v69 = vld [vmem:[%s1 + $0x48] sm:$0xff]
  %v70 = vld [vmem:[%s3] sm:$0xff]
  %v71 = vld [vmem:[%s5] sm:$0x1]
  %v73 = vperm.slane %v71, 0
  %vm75 = vcmask 64512
  %v77 = vsel %vm75, %v60, 0
  %v80 = vsel %vm75, %v61, 0
  %v83 = vsel %vm75, %v62, 0
  %v86 = vsel %vm75, %v63, 0
  %v89 = vsel %vm75, %v64, 0
  %v92 = vsel %vm75, %v65, 0
  %v95 = vsel %vm75, %v66, 0
  %v98 = vsel %vm75, %v67, 0
  %v101 = vsel %vm75, %v68, 0
  %v104 = vsel %vm75, %v69, 0
  %106 = vmatpush.msra.mxu0 0.0
  %107 = vmatpush.msra.mxu0 0.0
  %108 = vmatpush.msra.mxu0 0.0
  %109 = vmatpush.msra.mxu0 0.0
  %110 = vmatpush.msra.mxu0 0.0
  %111 = vmatpush.msra.mxu0 0.0
  %112 = vmatpush.msra.mxu0 0.0
  %113 = vmatpush.msra.mxu0 0.0
  %114 = vmatpush.msra.mxu0 0.0
  %115 = vmatpush.msra.mxu0 0.0
  %116 = vmatpush.msra.mxu0 0.0
  %117 = vmatpush.msra.mxu0 0.0
  %118 = vmatpush.msra.mxu0 0.0
  %119 = vmatpush.msra.mxu0 0.0
  %120 = vmatpush.msra.mxu0 0.0
  %121 = vmatpush.msra.mxu0 %v70
  %122 = vmatmul.f32.gmra.mxu0 %v77
  %v123 = vpop.f32.mrf.mxu0
  %v124 = vadd.f32 %v73, %v123
  %125 = vmatmul.f32.gmra.mxu0 %v80
  %v126 = vpop.f32.mrf.mxu0
  %v127 = vadd.f32 %v73, %v126
  %128 = vmatmul.f32.gmra.mxu0 %v83
  %v129 = vpop.f32.mrf.mxu0
  %v130 = vadd.f32 %v73, %v129
  %131 = vmatmul.f32.gmra.mxu0 %v86
  %v132 = vpop.f32.mrf.mxu0
  %v133 = vadd.f32 %v73, %v132
  %134 = vmatmul.f32.gmra.mxu0 %v89
  %v135 = vpop.f32.mrf.mxu0
  %v136 = vadd.f32 %v73, %v135
  %137 = vmatmul.f32.gmra.mxu0 %v92
  %v138 = vpop.f32.mrf.mxu0
  %v139 = vadd.f32 %v73, %v138
  %140 = vmatmul.f32.gmra.mxu0 %v95
  %v141 = vpop.f32.mrf.mxu0
  %v142 = vadd.f32 %v73, %v141
  %143 = vmatmul.f32.gmra.mxu0 %v98
  %v144 = vpop.f32.mrf.mxu0
  %v145 = vadd.f32 %v73, %v144
  %146 = vmatmul.f32.gmra.mxu0 %v101
  %v147 = vpop.f32.mrf.mxu0
  %v148 = vadd.f32 %v73, %v147
  %149 = vmatmul.f32.gmra.mxu0 %v104
  %v150 = vpop.f32.mrf.mxu0
  %v151 = vadd.f32 %v73, %v150
  %152 = vdwg.mxu0
  %v153 = vld [vmem:[%s2] sm:$0xff]
  %v154 = vld [vmem:[%s2 + $0x8] sm:$0xff]
  %v155 = vld [vmem:[%s2 + $0x10] sm:$0xff]
  %v156 = vld [vmem:[%s2 + $0x18] sm:$0xff]
  %v157 = vld [vmem:[%s2 + $0x20] sm:$0xff]
  %v158 = vld [vmem:[%s2 + $0x28] sm:$0xff]
  %v159 = vld [vmem:[%s2 + $0x30] sm:$0xff]
  %v160 = vld [vmem:[%s2 + $0x38] sm:$0xff]
  %v161 = vld [vmem:[%s6] sm:$0xff]
  %v162 = vld [vmem:[%s7] sm:$0x1]
  %v164 = vperm.slane %v162, 0
  %v167 = vsel %vm75, %v153, 0
  %v170 = vsel %vm75, %v154, 0
  %v173 = vsel %vm75, %v155, 0
  %v176 = vsel %vm75, %v156, 0
  %v179 = vsel %vm75, %v157, 0
  %v182 = vsel %vm75, %v158, 0
  %v185 = vsel %vm75, %v159, 0
  %v188 = vsel %vm75, %v160, 0
  %190 = vmatpush.msra.mxu0 0.0
  %191 = vmatpush.msra.mxu0 0.0
  %192 = vmatpush.msra.mxu0 0.0
  %193 = vmatpush.msra.mxu0 0.0
  %194 = vmatpush.msra.mxu0 0.0
  %195 = vmatpush.msra.mxu0 0.0
  %196 = vmatpush.msra.mxu0 0.0
  %197 = vmatpush.msra.mxu0 0.0
  %198 = vmatpush.msra.mxu0 0.0
  %199 = vmatpush.msra.mxu0 0.0
  %200 = vmatpush.msra.mxu0 0.0
  %201 = vmatpush.msra.mxu0 0.0
  %202 = vmatpush.msra.mxu0 0.0
  %203 = vmatpush.msra.mxu0 0.0
  %204 = vmatpush.msra.mxu0 0.0
  %205 = vmatpush.msra.mxu0 %v161
  %206 = vmatmul.f32.gmra.mxu0 %v167
  %v207 = vpop.f32.mrf.mxu0
  %v208 = vadd.f32 %v164, %v207
  %209 = vmatmul.f32.gmra.mxu0 %v170
  %v210 = vpop.f32.mrf.mxu0
  %v211 = vadd.f32 %v164, %v210
  %212 = vmatmul.f32.gmra.mxu0 %v173
  %v213 = vpop.f32.mrf.mxu0
  %v214 = vadd.f32 %v164, %v213
  %215 = vmatmul.f32.gmra.mxu0 %v176
  %v216 = vpop.f32.mrf.mxu0
  %v217 = vadd.f32 %v164, %v216
  %218 = vmatmul.f32.gmra.mxu0 %v179
  %v219 = vpop.f32.mrf.mxu0
  %v220 = vadd.f32 %v164, %v219
  %221 = vmatmul.f32.gmra.mxu0 %v182
  %v222 = vpop.f32.mrf.mxu0
  %v223 = vadd.f32 %v164, %v222
  %224 = vmatmul.f32.gmra.mxu0 %v185
  %v225 = vpop.f32.mrf.mxu0
  %v226 = vadd.f32 %v164, %v225
  %227 = vmatmul.f32.gmra.mxu0 %v188
  %v228 = vpop.f32.mrf.mxu0
  %v229 = vadd.f32 %v164, %v228
  %230 = vdwg.mxu0
  %v231 = vld [vmem:[%s9] sm:$0x1]
  %v233 = vperm.slane %v231, 0
  %v235 = vxor.u32 %v124, 2147483648
  %v236 = vmul.f32 %v235, 1.442695
  %v237 = vpow.pop %v236
  %v238 = vadd.f32 %v237, 1.0
  %v239 = vrcp.pop %v238
  %v240 = vmul.f32 %v238, %v239
  %v241 = vsub.f32 1.0, %v240
  %v242 = vmul.f32 %v239, %v241
  %v243 = vadd.f32 %v239, %v242
  %vm244 = vweird.f32 %v238
  %vm245 = vweird.f32 %v239
  %vm246 = vmor %vm244, %vm245
  %v247 = vsel %vm246, %v239, %v243
  %v248 = vand.u32 2147483647, %v238
  %vm249 = vcmp.eq.f32.partialorder %v248, 8.507059e+37
  %v250 = vand.u32 %v238, 2147483648
  %v251 = vor.u32 1.1754944e-38, %v250
  %v252 = vsel %vm249, %v251, %v247
  %v253 = vmul.f32 1.0, %v252
  %v254 = vtanh.pop %v124
  %v255 = vmul.f32 %v253, 0.0
  %257 = vrot.lane.b32.xlu0 %v254, 64
  %v258 = vpop.permute.xlu0 %257
  %v260 = vmul.f32 %v253, %v258
  %262 = vrot.lane.b32.xlu0 %v260, 32
  %v263 = vpop.permute.xlu0 %262
  %v265 = vadd.f32 %v255, %v263
  %v266 = vtanh.pop %v265
  %268 = vrot.lane.b32.xlu0 %v266, 64
  %v269 = vpop.permute.xlu0 %268
  %v271 = vmul.f32 %v253, %v269
  %273 = vrot.lane.b32.xlu0 %v271, 32
  %v274 = vpop.permute.xlu0 %273
  %vm275 = vcmask 261120
  %v276 = vsel %vm275, %v274, 0
  %278 = vmatpush.msra.mxu0 0.0
  %279 = vmatpush.msra.mxu0 0.0
  %280 = vmatpush.msra.mxu0 0.0
  %281 = vmatpush.msra.mxu0 0.0
  %282 = vmatpush.msra.mxu0 0.0
  %283 = vmatpush.msra.mxu0 0.0
  %284 = vmatpush.msra.mxu0 0.0
  %285 = vmatpush.msra.mxu0 0.0
  %286 = vmatpush.msra.mxu0 0.0
  %287 = vmatpush.msra.mxu0 0.0
  %288 = vmatpush.msra.mxu0 0.0
  %289 = vmatpush.msra.mxu0 0.0
  %290 = vmatpush.msra.mxu0 %v47
  %291 = vmatpush.msra.mxu0 %v46
  %292 = vmatpush.msra.mxu0 %v45
  %293 = vmatpush.msra.mxu0 %v44
  %294 = vmatmul.f32.gmra.mxu0 %v276
  %v295 = vpop.f32.mrf.mxu0
  %v296 = vadd.f32 0.0, %v295
  %297 = vdwg.mxu0
  %v298 = vadd.f32 %v127, %v296
  %v299 = vxor.u32 %v298, 2147483648
  %v300 = vmul.f32 %v299, 1.442695
  %v301 = vpow.pop %v300
  %v302 = vadd.f32 %v301, 1.0
  %v303 = vrcp.pop %v302
  %v304 = vmul.f32 %v302, %v303
  %v305 = vsub.f32 1.0, %v304
  %v306 = vmul.f32 %v303, %v305
  %v307 = vadd.f32 %v303, %v306
  %vm308 = vweird.f32 %v302
  %vm309 = vweird.f32 %v303
  %vm310 = vmor %vm308, %vm309
  %v311 = vsel %vm310, %v303, %v307
  %v312 = vand.u32 2147483647, %v302
  %vm313 = vcmp.eq.f32.partialorder %v312, 8.507059e+37
  %v314 = vand.u32 %v302, 2147483648
  %v315 = vor.u32 1.1754944e-38, %v314
  %v316 = vsel %vm313, %v315, %v311
  %v317 = vmul.f32 1.0, %v316
  %v318 = vtanh.pop %v298
  %v319 = vmul.f32 %v317, %v265
  %321 = vrot.lane.b32.xlu0 %v318, 64
  %v322 = vpop.permute.xlu0 %321
  %v324 = vmul.f32 %v317, %v322
  %326 = vrot.lane.b32.xlu0 %v324, 32
  %v327 = vpop.permute.xlu0 %326
  %v329 = vadd.f32 %v319, %v327
  %v330 = vtanh.pop %v329
  %332 = vrot.lane.b32.xlu0 %v330, 64
  %v333 = vpop.permute.xlu0 %332
  %v335 = vmul.f32 %v317, %v333
  %337 = vrot.lane.b32.xlu0 %v335, 32
  %v338 = vpop.permute.xlu0 %337
  %v339 = vsel %vm275, %v338, 0
  %341 = vmatpush.msra.mxu0 0.0
  %342 = vmatpush.msra.mxu0 0.0
  %343 = vmatpush.msra.mxu0 0.0
  %344 = vmatpush.msra.mxu0 0.0
  %345 = vmatpush.msra.mxu0 0.0
  %346 = vmatpush.msra.mxu0 0.0
  %347 = vmatpush.msra.mxu0 0.0
  %348 = vmatpush.msra.mxu0 0.0
  %349 = vmatpush.msra.mxu0 0.0
  %350 = vmatpush.msra.mxu0 0.0
  %351 = vmatpush.msra.mxu0 0.0
  %352 = vmatpush.msra.mxu0 0.0
  %353 = vmatpush.msra.mxu0 %v47
  %354 = vmatpush.msra.mxu0 %v46
  %355 = vmatpush.msra.mxu0 %v45
  %356 = vmatpush.msra.mxu0 %v44
  %357 = vmatmul.f32.gmra.mxu0 %v339
  %v358 = vpop.f32.mrf.mxu0
  %v359 = vadd.f32 0.0, %v358
  %360 = vdwg.mxu0
  %v361 = vadd.f32 %v130, %v359
  %v362 = vxor.u32 %v361, 2147483648
  %v363 = vmul.f32 %v362, 1.442695
  %v364 = vpow.pop %v363
  %v365 = vadd.f32 %v364, 1.0
  %v366 = vrcp.pop %v365
  %v367 = vmul.f32 %v365, %v366
  %v368 = vsub.f32 1.0, %v367
  %v369 = vmul.f32 %v366, %v368
  %v370 = vadd.f32 %v366, %v369
  %vm371 = vweird.f32 %v365
  %vm372 = vweird.f32 %v366
  %vm373 = vmor %vm371, %vm372
  %v374 = vsel %vm373, %v366, %v370
  %v375 = vand.u32 2147483647, %v365
  %vm376 = vcmp.eq.f32.partialorder %v375, 8.507059e+37
  %v377 = vand.u32 %v365, 2147483648
  %v378 = vor.u32 1.1754944e-38, %v377
  %v379 = vsel %vm376, %v378, %v374
  %v380 = vmul.f32 1.0, %v379
  %v381 = vtanh.pop %v361
  %v382 = vmul.f32 %v380, %v329
  %384 = vrot.lane.b32.xlu0 %v381, 64
  %v385 = vpop.permute.xlu0 %384
  %v387 = vmul.f32 %v380, %v385
  %389 = vrot.lane.b32.xlu0 %v387, 32
  %v390 = vpop.permute.xlu0 %389
  %v392 = vadd.f32 %v382, %v390
  %v393 = vtanh.pop %v392
  %395 = vrot.lane.b32.xlu0 %v393, 64
  %v396 = vpop.permute.xlu0 %395
  %v398 = vmul.f32 %v380, %v396
  %400 = vrot.lane.b32.xlu0 %v398, 32
  %v401 = vpop.permute.xlu0 %400
  %v402 = vsel %vm275, %v401, 0
  %404 = vmatpush.msra.mxu0 0.0
  %405 = vmatpush.msra.mxu0 0.0
  %406 = vmatpush.msra.mxu0 0.0
  %407 = vmatpush.msra.mxu0 0.0
  %408 = vmatpush.msra.mxu0 0.0
  %409 = vmatpush.msra.mxu0 0.0
  %410 = vmatpush.msra.mxu0 0.0
  %411 = vmatpush.msra.mxu0 0.0
  %412 = vmatpush.msra.mxu0 0.0
  %413 = vmatpush.msra.mxu0 0.0
  %414 = vmatpush.msra.mxu0 0.0
  %415 = vmatpush.msra.mxu0 0.0
  %416 = vmatpush.msra.mxu0 %v47
  %417 = vmatpush.msra.mxu0 %v46
  %418 = vmatpush.msra.mxu0 %v45
  %419 = vmatpush.msra.mxu0 %v44
  %420 = vmatmul.f32.gmra.mxu0 %v402
  %v421 = vpop.f32.mrf.mxu0
  %v422 = vadd.f32 0.0, %v421
  %423 = vdwg.mxu0
  %v424 = vadd.f32 %v133, %v422
  %v425 = vxor.u32 %v424, 2147483648
  %v426 = vmul.f32 %v425, 1.442695
  %v427 = vpow.pop %v426
  %v428 = vadd.f32 %v427, 1.0
  %v429 = vrcp.pop %v428
  %v430 = vmul.f32 %v428, %v429
  %v431 = vsub.f32 1.0, %v430
  %v432 = vmul.f32 %v429, %v431
  %v433 = vadd.f32 %v429, %v432
  %vm434 = vweird.f32 %v428
  %vm435 = vweird.f32 %v429
  %vm436 = vmor %vm434, %vm435
  %v437 = vsel %vm436, %v429, %v433
  %v438 = vand.u32 2147483647, %v428
  %vm439 = vcmp.eq.f32.partialorder %v438, 8.507059e+37
  %v440 = vand.u32 %v428, 2147483648
  %v441 = vor.u32 1.1754944e-38, %v440
  %v442 = vsel %vm439, %v441, %v437
  %v443 = vmul.f32 1.0, %v442
  %v444 = vtanh.pop %v424
  %v445 = vmul.f32 %v443, %v392
  %447 = vrot.lane.b32.xlu0 %v444, 64
  %v448 = vpop.permute.xlu0 %447
  %v450 = vmul.f32 %v443, %v448
  %452 = vrot.lane.b32.xlu0 %v450, 32
  %v453 = vpop.permute.xlu0 %452
  %v455 = vadd.f32 %v445, %v453
  %v456 = vtanh.pop %v455
  %458 = vrot.lane.b32.xlu0 %v456, 64
  %v459 = vpop.permute.xlu0 %458
  %v461 = vmul.f32 %v443, %v459
  %463 = vrot.lane.b32.xlu0 %v461, 32
  %v464 = vpop.permute.xlu0 %463
  %v465 = vsel %vm275, %v464, 0
  %467 = vmatpush.msra.mxu0 0.0
  %468 = vmatpush.msra.mxu0 0.0
  %469 = vmatpush.msra.mxu0 0.0
  %470 = vmatpush.msra.mxu0 0.0
  %471 = vmatpush.msra.mxu0 0.0
  %472 = vmatpush.msra.mxu0 0.0
  %473 = vmatpush.msra.mxu0 0.0
  %474 = vmatpush.msra.mxu0 0.0
  %475 = vmatpush.msra.mxu0 0.0
  %476 = vmatpush.msra.mxu0 0.0
  %477 = vmatpush.msra.mxu0 0.0
  %478 = vmatpush.msra.mxu0 0.0
  %479 = vmatpush.msra.mxu0 %v47
  %480 = vmatpush.msra.mxu0 %v46
  %481 = vmatpush.msra.mxu0 %v45
  %482 = vmatpush.msra.mxu0 %v44
  %483 = vmatmul.f32.gmra.mxu0 %v465
  %v484 = vpop.f32.mrf.mxu0
  %v485 = vadd.f32 0.0, %v484
  %486 = vdwg.mxu0
  %v487 = vadd.f32 %v136, %v485
  %v488 = vxor.u32 %v487, 2147483648
  %v489 = vmul.f32 %v488, 1.442695
  %v490 = vpow.pop %v489
  %v491 = vadd.f32 %v490, 1.0
  %v492 = vrcp.pop %v491
  %v493 = vmul.f32 %v491, %v492
  %v494 = vsub.f32 1.0, %v493
  %v495 = vmul.f32 %v492, %v494
  %v496 = vadd.f32 %v492, %v495
  %vm497 = vweird.f32 %v491
  %vm498 = vweird.f32 %v492
  %vm499 = vmor %vm497, %vm498
  %v500 = vsel %vm499, %v492, %v496
  %v501 = vand.u32 2147483647, %v491
  %vm502 = vcmp.eq.f32.partialorder %v501, 8.507059e+37
  %v503 = vand.u32 %v491, 2147483648
  %v504 = vor.u32 1.1754944e-38, %v503
  %v505 = vsel %vm502, %v504, %v500
  %v506 = vmul.f32 1.0, %v505
  %v507 = vtanh.pop %v487
  %v508 = vmul.f32 %v506, %v455
  %510 = vrot.lane.b32.xlu0 %v507, 64
  %v511 = vpop.permute.xlu0 %510
  %v513 = vmul.f32 %v506, %v511
  %515 = vrot.lane.b32.xlu0 %v513, 32
  %v516 = vpop.permute.xlu0 %515
  %v518 = vadd.f32 %v508, %v516
  %v519 = vtanh.pop %v518
  %521 = vrot.lane.b32.xlu0 %v519, 64
  %v522 = vpop.permute.xlu0 %521
  %v524 = vmul.f32 %v506, %v522
  %526 = vrot.lane.b32.xlu0 %v524, 32
  %v527 = vpop.permute.xlu0 %526
  %v528 = vsel %vm275, %v527, 0
  %530 = vmatpush.msra.mxu0 0.0
  %531 = vmatpush.msra.mxu0 0.0
  %532 = vmatpush.msra.mxu0 0.0
  %533 = vmatpush.msra.mxu0 0.0
  %534 = vmatpush.msra.mxu0 0.0
  %535 = vmatpush.msra.mxu0 0.0
  %536 = vmatpush.msra.mxu0 0.0
  %537 = vmatpush.msra.mxu0 0.0
  %538 = vmatpush.msra.mxu0 0.0
  %539 = vmatpush.msra.mxu0 0.0
  %540 = vmatpush.msra.mxu0 0.0
  %541 = vmatpush.msra.mxu0 0.0
  %542 = vmatpush.msra.mxu0 %v47
  %543 = vmatpush.msra.mxu0 %v46
  %544 = vmatpush.msra.mxu0 %v45
  %545 = vmatpush.msra.mxu0 %v44
  %546 = vmatmul.f32.gmra.mxu0 %v528
  %v547 = vpop.f32.mrf.mxu0
  %v548 = vadd.f32 0.0, %v547
  %549 = vdwg.mxu0
  %v550 = vadd.f32 %v139, %v548
  %v551 = vxor.u32 %v550, 2147483648
  %v552 = vmul.f32 %v551, 1.442695
  %v553 = vpow.pop %v552
  %v554 = vadd.f32 %v553, 1.0
  %v555 = vrcp.pop %v554
  %v556 = vmul.f32 %v554, %v555
  %v557 = vsub.f32 1.0, %v556
  %v558 = vmul.f32 %v555, %v557
  %v559 = vadd.f32 %v555, %v558
  %vm560 = vweird.f32 %v554
  %vm561 = vweird.f32 %v555
  %vm562 = vmor %vm560, %vm561
  %v563 = vsel %vm562, %v555, %v559
  %v564 = vand.u32 2147483647, %v554
  %vm565 = vcmp.eq.f32.partialorder %v564, 8.507059e+37
  %v566 = vand.u32 %v554, 2147483648
  %v567 = vor.u32 1.1754944e-38, %v566
  %v568 = vsel %vm565, %v567, %v563
  %v569 = vmul.f32 1.0, %v568
  %v570 = vtanh.pop %v550
  %v571 = vmul.f32 %v569, %v518
  %573 = vrot.lane.b32.xlu0 %v570, 64
  %v574 = vpop.permute.xlu0 %573
  %v576 = vmul.f32 %v569, %v574
  %578 = vrot.lane.b32.xlu0 %v576, 32
  %v579 = vpop.permute.xlu0 %578
  %v581 = vadd.f32 %v571, %v579
  %v582 = vtanh.pop %v581
  %584 = vrot.lane.b32.xlu0 %v582, 64
  %v585 = vpop.permute.xlu0 %584
  %v587 = vmul.f32 %v569, %v585
  %589 = vrot.lane.b32.xlu0 %v587, 32
  %v590 = vpop.permute.xlu0 %589
  %v591 = vsel %vm275, %v590, 0
  %593 = vmatpush.msra.mxu0 0.0
  %594 = vmatpush.msra.mxu0 0.0
  %595 = vmatpush.msra.mxu0 0.0
  %596 = vmatpush.msra.mxu0 0.0
  %597 = vmatpush.msra.mxu0 0.0
  %598 = vmatpush.msra.mxu0 0.0
  %599 = vmatpush.msra.mxu0 0.0
  %600 = vmatpush.msra.mxu0 0.0
  %601 = vmatpush.msra.mxu0 0.0
  %602 = vmatpush.msra.mxu0 0.0
  %603 = vmatpush.msra.mxu0 0.0
  %604 = vmatpush.msra.mxu0 0.0
  %605 = vmatpush.msra.mxu0 %v47
  %606 = vmatpush.msra.mxu0 %v46
  %607 = vmatpush.msra.mxu0 %v45
  %608 = vmatpush.msra.mxu0 %v44
  %609 = vmatmul.f32.gmra.mxu0 %v591
  %v610 = vpop.f32.mrf.mxu0
  %v611 = vadd.f32 0.0, %v610
  %612 = vdwg.mxu0
  %v613 = vadd.f32 %v142, %v611
  %v614 = vxor.u32 %v613, 2147483648
  %v615 = vmul.f32 %v614, 1.442695
  %v616 = vpow.pop %v615
  %v617 = vadd.f32 %v616, 1.0
  %v618 = vrcp.pop %v617
  %v619 = vmul.f32 %v617, %v618
  %v620 = vsub.f32 1.0, %v619
  %v621 = vmul.f32 %v618, %v620
  %v622 = vadd.f32 %v618, %v621
  %vm623 = vweird.f32 %v617
  %vm624 = vweird.f32 %v618
  %vm625 = vmor %vm623, %vm624
  %v626 = vsel %vm625, %v618, %v622
  %v627 = vand.u32 2147483647, %v617
  %vm628 = vcmp.eq.f32.partialorder %v627, 8.507059e+37
  %v629 = vand.u32 %v617, 2147483648
  %v630 = vor.u32 1.1754944e-38, %v629
  %v631 = vsel %vm628, %v630, %v626
  %v632 = vmul.f32 1.0, %v631
  %v633 = vtanh.pop %v613
  %v634 = vmul.f32 %v632, %v581
  %636 = vrot.lane.b32.xlu0 %v633, 64
  %v637 = vpop.permute.xlu0 %636
  %v639 = vmul.f32 %v632, %v637
  %641 = vrot.lane.b32.xlu0 %v639, 32
  %v642 = vpop.permute.xlu0 %641
  %v644 = vadd.f32 %v634, %v642
  %v645 = vtanh.pop %v644
  %647 = vrot.lane.b32.xlu0 %v645, 64
  %v648 = vpop.permute.xlu0 %647
  %v650 = vmul.f32 %v632, %v648
  %652 = vrot.lane.b32.xlu0 %v650, 32
  %v653 = vpop.permute.xlu0 %652
  %v654 = vsel %vm275, %v653, 0
  %656 = vmatpush.msra.mxu0 0.0
  %657 = vmatpush.msra.mxu0 0.0
  %658 = vmatpush.msra.mxu0 0.0
  %659 = vmatpush.msra.mxu0 0.0
  %660 = vmatpush.msra.mxu0 0.0
  %661 = vmatpush.msra.mxu0 0.0
  %662 = vmatpush.msra.mxu0 0.0
  %663 = vmatpush.msra.mxu0 0.0
  %664 = vmatpush.msra.mxu0 0.0
  %665 = vmatpush.msra.mxu0 0.0
  %666 = vmatpush.msra.mxu0 0.0
  %667 = vmatpush.msra.mxu0 0.0
  %668 = vmatpush.msra.mxu0 %v47
  %669 = vmatpush.msra.mxu0 %v46
  %670 = vmatpush.msra.mxu0 %v45
  %671 = vmatpush.msra.mxu0 %v44
  %672 = vmatmul.f32.gmra.mxu0 %v654
  %v673 = vpop.f32.mrf.mxu0
  %v674 = vadd.f32 0.0, %v673
  %675 = vdwg.mxu0
  %v676 = vadd.f32 %v145, %v674
  %v677 = vxor.u32 %v676, 2147483648
  %v678 = vmul.f32 %v677, 1.442695
  %v679 = vpow.pop %v678
  %v680 = vadd.f32 %v679, 1.0
  %v681 = vrcp.pop %v680
  %v682 = vmul.f32 %v680, %v681
  %v683 = vsub.f32 1.0, %v682
  %v684 = vmul.f32 %v681, %v683
  %v685 = vadd.f32 %v681, %v684
  %vm686 = vweird.f32 %v680
  %vm687 = vweird.f32 %v681
  %vm688 = vmor %vm686, %vm687
  %v689 = vsel %vm688, %v681, %v685
  %v690 = vand.u32 2147483647, %v680
  %vm691 = vcmp.eq.f32.partialorder %v690, 8.507059e+37
  %v692 = vand.u32 %v680, 2147483648
  %v693 = vor.u32 1.1754944e-38, %v692
  %v694 = vsel %vm691, %v693, %v689
  %v695 = vmul.f32 1.0, %v694
  %v696 = vtanh.pop %v676
  %v697 = vmul.f32 %v695, %v644
  %699 = vrot.lane.b32.xlu0 %v696, 64
  %v700 = vpop.permute.xlu0 %699
  %v702 = vmul.f32 %v695, %v700
  %704 = vrot.lane.b32.xlu0 %v702, 32
  %v705 = vpop.permute.xlu0 %704
  %v707 = vadd.f32 %v697, %v705
  %v708 = vtanh.pop %v707
  %710 = vrot.lane.b32.xlu0 %v708, 64
  %v711 = vpop.permute.xlu0 %710
  %v713 = vmul.f32 %v695, %v711
  %715 = vrot.lane.b32.xlu0 %v713, 32
  %v716 = vpop.permute.xlu0 %715
  %v717 = vsel %vm275, %v716, 0
  %719 = vmatpush.msra.mxu0 0.0
  %720 = vmatpush.msra.mxu0 0.0
  %721 = vmatpush.msra.mxu0 0.0
  %722 = vmatpush.msra.mxu0 0.0
  %723 = vmatpush.msra.mxu0 0.0
  %724 = vmatpush.msra.mxu0 0.0
  %725 = vmatpush.msra.mxu0 0.0
  %726 = vmatpush.msra.mxu0 0.0
  %727 = vmatpush.msra.mxu0 0.0
  %728 = vmatpush.msra.mxu0 0.0
  %729 = vmatpush.msra.mxu0 0.0
  %730 = vmatpush.msra.mxu0 0.0
  %731 = vmatpush.msra.mxu0 %v47
  %732 = vmatpush.msra.mxu0 %v46
  %733 = vmatpush.msra.mxu0 %v45
  %734 = vmatpush.msra.mxu0 %v44
  %735 = vmatmul.f32.gmra.mxu0 %v717
  %v736 = vpop.f32.mrf.mxu0
  %v737 = vadd.f32 0.0, %v736
  %738 = vdwg.mxu0
  %v739 = vadd.f32 %v148, %v737
  %v740 = vxor.u32 %v739, 2147483648
  %v741 = vmul.f32 %v740, 1.442695
  %v742 = vpow.pop %v741
  %v743 = vadd.f32 %v742, 1.0
  %v744 = vrcp.pop %v743
  %v745 = vmul.f32 %v743, %v744
  %v746 = vsub.f32 1.0, %v745
  %v747 = vmul.f32 %v744, %v746
  %v748 = vadd.f32 %v744, %v747
  %vm749 = vweird.f32 %v743
  %vm750 = vweird.f32 %v744
  %vm751 = vmor %vm749, %vm750
  %v752 = vsel %vm751, %v744, %v748
  %v753 = vand.u32 2147483647, %v743
  %vm754 = vcmp.eq.f32.partialorder %v753, 8.507059e+37
  %v755 = vand.u32 %v743, 2147483648
  %v756 = vor.u32 1.1754944e-38, %v755
  %v757 = vsel %vm754, %v756, %v752
  %v758 = vmul.f32 1.0, %v757
  %v759 = vtanh.pop %v739
  %v760 = vmul.f32 %v758, %v707
  %762 = vrot.lane.b32.xlu0 %v759, 64
  %v763 = vpop.permute.xlu0 %762
  %v765 = vmul.f32 %v758, %v763
  %767 = vrot.lane.b32.xlu0 %v765, 32
  %v768 = vpop.permute.xlu0 %767
  %v770 = vadd.f32 %v760, %v768
  %v771 = vtanh.pop %v770
  %773 = vrot.lane.b32.xlu0 %v771, 64
  %v774 = vpop.permute.xlu0 %773
  %v776 = vmul.f32 %v758, %v774
  %778 = vrot.lane.b32.xlu0 %v776, 32
  %v779 = vpop.permute.xlu0 %778
  %v780 = vsel %vm275, %v779, 0
  %782 = vmatpush.msra.mxu0 0.0
  %783 = vmatpush.msra.mxu0 0.0
  %784 = vmatpush.msra.mxu0 0.0
  %785 = vmatpush.msra.mxu0 0.0
  %786 = vmatpush.msra.mxu0 0.0
  %787 = vmatpush.msra.mxu0 0.0
  %788 = vmatpush.msra.mxu0 0.0
  %789 = vmatpush.msra.mxu0 0.0
  %790 = vmatpush.msra.mxu0 0.0
  %791 = vmatpush.msra.mxu0 0.0
  %792 = vmatpush.msra.mxu0 0.0
  %793 = vmatpush.msra.mxu0 0.0
  %794 = vmatpush.msra.mxu0 %v47
  %795 = vmatpush.msra.mxu0 %v46
  %796 = vmatpush.msra.mxu0 %v45
  %797 = vmatpush.msra.mxu0 %v44
  %798 = vmatmul.f32.gmra.mxu0 %v780
  %v799 = vpop.f32.mrf.mxu0
  %v800 = vadd.f32 0.0, %v799
  %801 = vdwg.mxu0
  %v802 = vadd.f32 %v151, %v800
  %v803 = vxor.u32 %v802, 2147483648
  %v804 = vmul.f32 %v803, 1.442695
  %v805 = vpow.pop %v804
  %v806 = vadd.f32 %v805, 1.0
  %v807 = vrcp.pop %v806
  %v808 = vmul.f32 %v806, %v807
  %v809 = vsub.f32 1.0, %v808
  %v810 = vmul.f32 %v807, %v809
  %v811 = vadd.f32 %v807, %v810
  %vm812 = vweird.f32 %v806
  %vm813 = vweird.f32 %v807
  %vm814 = vmor %vm812, %vm813
  %v815 = vsel %vm814, %v807, %v811
  %v816 = vand.u32 2147483647, %v806
  %vm817 = vcmp.eq.f32.partialorder %v816, 8.507059e+37
  %v818 = vand.u32 %v806, 2147483648
  %v819 = vor.u32 1.1754944e-38, %v818
  %v820 = vsel %vm817, %v819, %v815
  %v821 = vmul.f32 1.0, %v820
  %v822 = vtanh.pop %v802
  %v823 = vmul.f32 %v821, %v770
  %825 = vrot.lane.b32.xlu0 %v822, 64
  %v826 = vpop.permute.xlu0 %825
  %v828 = vmul.f32 %v821, %v826
  %830 = vrot.lane.b32.xlu0 %v828, 32
  %v831 = vpop.permute.xlu0 %830
  %v833 = vadd.f32 %v823, %v831
  %v834 = vtanh.pop %v833
  %836 = vrot.lane.b32.xlu0 %v834, 64
  %v837 = vpop.permute.xlu0 %836
  %v839 = vmul.f32 %v821, %v837
  %841 = vrot.lane.b32.xlu0 %v839, 32
  %v842 = vpop.permute.xlu0 %841
  %v843 = vsel %vm275, %v842, 0
  %845 = vmatpush.msra.mxu0 0.0
  %846 = vmatpush.msra.mxu0 0.0
  %847 = vmatpush.msra.mxu0 0.0
  %848 = vmatpush.msra.mxu0 0.0
  %849 = vmatpush.msra.mxu0 0.0
  %850 = vmatpush.msra.mxu0 0.0
  %851 = vmatpush.msra.mxu0 0.0
  %852 = vmatpush.msra.mxu0 0.0
  %853 = vmatpush.msra.mxu0 0.0
  %854 = vmatpush.msra.mxu0 0.0
  %855 = vmatpush.msra.mxu0 0.0
  %856 = vmatpush.msra.mxu0 0.0
  %857 = vmatpush.msra.mxu0 %v57
  %858 = vmatpush.msra.mxu0 %v54
  %859 = vmatpush.msra.mxu0 %v51
  %860 = vmatpush.msra.mxu0 %v48
  %861 = vmatmul.f32.gmra.mxu0 %v843
  %v862 = vpop.f32.mrf.mxu0
  %v863 = vadd.f32 0.0, %v862
  %864 = vdwg.mxu0
  %v865 = vadd.f32 %v208, %v863
  %v866 = vxor.u32 %v865, 2147483648
  %v867 = vmul.f32 %v866, 1.442695
  %v868 = vpow.pop %v867
  %v869 = vadd.f32 %v868, 1.0
  %v870 = vrcp.pop %v869
  %v871 = vmul.f32 %v869, %v870
  %v872 = vsub.f32 1.0, %v871
  %v873 = vmul.f32 %v870, %v872
  %v874 = vadd.f32 %v870, %v873
  %vm875 = vweird.f32 %v869
  %vm876 = vweird.f32 %v870
  %vm877 = vmor %vm875, %vm876
  %v878 = vsel %vm877, %v870, %v874
  %v879 = vand.u32 2147483647, %v869
  %vm880 = vcmp.eq.f32.partialorder %v879, 8.507059e+37
  %v881 = vand.u32 %v869, 2147483648
  %v882 = vor.u32 1.1754944e-38, %v881
  %v883 = vsel %vm880, %v882, %v878
  %v884 = vmul.f32 1.0, %v883
  %v885 = vtanh.pop %v865
  %v886 = vmul.f32 %v884, %v833
  %888 = vrot.lane.b32.xlu0 %v885, 64
  %v889 = vpop.permute.xlu0 %888
  %v891 = vmul.f32 %v884, %v889
  %893 = vrot.lane.b32.xlu0 %v891, 32
  %v894 = vpop.permute.xlu0 %893
  %v896 = vadd.f32 %v886, %v894
  %v897 = vtanh.pop %v896
  %899 = vrot.lane.b32.xlu0 %v897, 64
  %v900 = vpop.permute.xlu0 %899
  %v902 = vmul.f32 %v884, %v900
  %904 = vrot.lane.b32.xlu0 %v902, 32
  %v905 = vpop.permute.xlu0 %904
  %v906 = vsel %vm275, %v905, 0
  %908 = vmatpush.msra.mxu0 0.0
  %909 = vmatpush.msra.mxu0 0.0
  %910 = vmatpush.msra.mxu0 0.0
  %911 = vmatpush.msra.mxu0 0.0
  %912 = vmatpush.msra.mxu0 0.0
  %913 = vmatpush.msra.mxu0 0.0
  %914 = vmatpush.msra.mxu0 0.0
  %915 = vmatpush.msra.mxu0 0.0
  %916 = vmatpush.msra.mxu0 0.0
  %917 = vmatpush.msra.mxu0 0.0
  %918 = vmatpush.msra.mxu0 0.0
  %919 = vmatpush.msra.mxu0 0.0
  %920 = vmatpush.msra.mxu0 %v57
  %921 = vmatpush.msra.mxu0 %v54
  %922 = vmatpush.msra.mxu0 %v51
  %923 = vmatpush.msra.mxu0 %v48
  %924 = vmatmul.f32.gmra.mxu0 %v906
  %v925 = vpop.f32.mrf.mxu0
  %v926 = vadd.f32 0.0, %v925
  %927 = vdwg.mxu0
  %928 = vmatpush.msra.mxu0 0.0
  %929 = vmatpush.msra.mxu0 0.0
  %930 = vmatpush.msra.mxu0 0.0
  %931 = vmatpush.msra.mxu0 0.0
  %932 = vmatpush.msra.mxu0 0.0
  %933 = vmatpush.msra.mxu0 0.0
  %934 = vmatpush.msra.mxu0 0.0
  %935 = vmatpush.msra.mxu0 0.0
  %936 = vmatpush.msra.mxu0 0.0
  %937 = vmatpush.msra.mxu0 0.0
  %938 = vmatpush.msra.mxu0 0.0
  %939 = vmatpush.msra.mxu0 0.0
  %940 = vmatpush.msra.mxu0 %v58
  %941 = vmatpush.msra.mxu0 %v55
  %942 = vmatpush.msra.mxu0 %v52
  %943 = vmatpush.msra.mxu0 %v49
  %944 = vmatmul.f32.gmra.mxu0 %v906
  %v945 = vpop.f32.mrf.mxu0
  %v946 = vadd.f32 0.0, %v945
  %947 = vdwg.mxu0
  %948 = vmatpush.msra.mxu0 0.0
  %949 = vmatpush.msra.mxu0 0.0
  %950 = vmatpush.msra.mxu0 0.0
  %951 = vmatpush.msra.mxu0 0.0
  %952 = vmatpush.msra.mxu0 0.0
  %953 = vmatpush.msra.mxu0 0.0
  %954 = vmatpush.msra.mxu0 0.0
  %955 = vmatpush.msra.mxu0 0.0
  %956 = vmatpush.msra.mxu0 0.0
  %957 = vmatpush.msra.mxu0 0.0
  %958 = vmatpush.msra.mxu0 0.0
  %959 = vmatpush.msra.mxu0 0.0
  %960 = vmatpush.msra.mxu0 %v59
  %961 = vmatpush.msra.mxu0 %v56
  %962 = vmatpush.msra.mxu0 %v53
  %963 = vmatpush.msra.mxu0 %v50
  %964 = vmatmul.f32.gmra.mxu0 %v906
  %v965 = vpop.f32.mrf.mxu0
  %v966 = vadd.f32 0.0, %v965
  %967 = vdwg.mxu0
  %v968 = vadd.f32 %v946, %v233
  %s969 = sld [smem:[#allocation3]]
  %s970 = scvt.s32.f32 %s969
  %v971 = vstv %s970
  %v972 = vmul.f32 %v971, %v211
  %s973 = ssub.f32 1.0, %s970
  %v974 = vstv %s973
  %v975 = vmul.f32 %v974, %v968
  %v976 = vadd.f32 %v972, %v975
  %v977 = vadd.f32 %v976, %v926
  %v978 = vxor.u32 %v977, 2147483648
  %v979 = vmul.f32 %v978, 1.442695
  %v980 = vpow.pop %v979
  %v981 = vadd.f32 %v980, 1.0
  %v982 = vrcp.pop %v981
  %v983 = vmul.f32 %v981, %v982
  %v984 = vsub.f32 1.0, %v983
  %v985 = vmul.f32 %v982, %v984
  %v986 = vadd.f32 %v982, %v985
  %vm987 = vweird.f32 %v981
  %vm988 = vweird.f32 %v982
  %vm989 = vmor %vm987, %vm988
  %v990 = vsel %vm989, %v982, %v986
  %v991 = vand.u32 2147483647, %v981
  %vm992 = vcmp.eq.f32.partialorder %v991, 8.507059e+37
  %v993 = vand.u32 %v981, 2147483648
  %v994 = vor.u32 1.1754944e-38, %v993
  %v995 = vsel %vm992, %v994, %v990
  %v996 = vmul.f32 1.0, %v995
  %v997 = vtanh.pop %v977
  %v998 = vmul.f32 %v996, %v896
  %1000 = vrot.lane.b32.xlu0 %v997, 64
  %v1001 = vpop.permute.xlu0 %1000
  %v1003 = vmul.f32 %v996, %v1001
  %1005 = vrot.lane.b32.xlu0 %v1003, 32
  %v1006 = vpop.permute.xlu0 %1005
  %v1008 = vadd.f32 %v998, %v1006
  %v1009 = vtanh.pop %v1008
  %1011 = vrot.lane.b32.xlu0 %v1009, 64
  %v1012 = vpop.permute.xlu0 %1011
  %v1014 = vmul.f32 %v996, %v1012
  %1016 = vrot.lane.b32.xlu0 %v1014, 32
  %v1017 = vpop.permute.xlu0 %1016
  %v1018 = vsel %vm275, %v1017, 0
  %1020 = vmatpush.msra.mxu0 0.0
  %1021 = vmatpush.msra.mxu0 0.0
  %1022 = vmatpush.msra.mxu0 0.0
  %1023 = vmatpush.msra.mxu0 0.0
  %1024 = vmatpush.msra.mxu0 0.0
  %1025 = vmatpush.msra.mxu0 0.0
  %1026 = vmatpush.msra.mxu0 0.0
  %1027 = vmatpush.msra.mxu0 0.0
  %1028 = vmatpush.msra.mxu0 0.0
  %1029 = vmatpush.msra.mxu0 0.0
  %1030 = vmatpush.msra.mxu0 0.0
  %1031 = vmatpush.msra.mxu0 0.0
  %1032 = vmatpush.msra.mxu0 %v57
  %1033 = vmatpush.msra.mxu0 %v54
  %1034 = vmatpush.msra.mxu0 %v51
  %1035 = vmatpush.msra.mxu0 %v48
  %1036 = vmatmul.f32.gmra.mxu0 %v1018
  %v1037 = vpop.f32.mrf.mxu0
  %v1038 = vadd.f32 0.0, %v1037
  %1039 = vdwg.mxu0
  %1040 = vmatpush.msra.mxu0 0.0
  %1041 = vmatpush.msra.mxu0 0.0
  %1042 = vmatpush.msra.mxu0 0.0
  %1043 = vmatpush.msra.mxu0 0.0
  %1044 = vmatpush.msra.mxu0 0.0
  %1045 = vmatpush.msra.mxu0 0.0
  %1046 = vmatpush.msra.mxu0 0.0
  %1047 = vmatpush.msra.mxu0 0.0
  %1048 = vmatpush.msra.mxu0 0.0
  %1049 = vmatpush.msra.mxu0 0.0
  %1050 = vmatpush.msra.mxu0 0.0
  %1051 = vmatpush.msra.mxu0 0.0
  %1052 = vmatpush.msra.mxu0 %v58
  %1053 = vmatpush.msra.mxu0 %v55
  %1054 = vmatpush.msra.mxu0 %v52
  %1055 = vmatpush.msra.mxu0 %v49
  %1056 = vmatmul.f32.gmra.mxu0 %v1018
  %v1057 = vpop.f32.mrf.mxu0
  %v1058 = vadd.f32 0.0, %v1057
  %1059 = vdwg.mxu0
  %1060 = vmatpush.msra.mxu0 0.0
  %1061 = vmatpush.msra.mxu0 0.0
  %1062 = vmatpush.msra.mxu0 0.0
  %1063 = vmatpush.msra.mxu0 0.0
  %1064 = vmatpush.msra.mxu0 0.0
  %1065 = vmatpush.msra.mxu0 0.0
  %1066 = vmatpush.msra.mxu0 0.0
  %1067 = vmatpush.msra.mxu0 0.0
  %1068 = vmatpush.msra.mxu0 0.0
  %1069 = vmatpush.msra.mxu0 0.0
  %1070 = vmatpush.msra.mxu0 0.0
  %1071 = vmatpush.msra.mxu0 0.0
  %1072 = vmatpush.msra.mxu0 %v59
  %1073 = vmatpush.msra.mxu0 %v56
  %1074 = vmatpush.msra.mxu0 %v53
  %1075 = vmatpush.msra.mxu0 %v50
  %1076 = vmatmul.f32.gmra.mxu0 %v1018
  %v1077 = vpop.f32.mrf.mxu0
  %v1078 = vadd.f32 0.0, %v1077
  %1079 = vdwg.mxu0
  %v1080 = vadd.f32 %v1058, %v233
  %s1081 = sld [smem:[#allocation3 + $0x1]]
  %s1082 = scvt.s32.f32 %s1081
  %v1083 = vstv %s1082
  %v1084 = vmul.f32 %v1083, %v214
  %s1085 = ssub.f32 1.0, %s1082
  %v1086 = vstv %s1085
  %v1087 = vmul.f32 %v1086, %v1080
  %v1088 = vadd.f32 %v1084, %v1087
  %v1089 = vadd.f32 %v1088, %v1038
  %v1090 = vxor.u32 %v1089, 2147483648
  %v1091 = vmul.f32 %v1090, 1.442695
  %v1092 = vpow.pop %v1091
  %v1093 = vadd.f32 %v1092, 1.0
  %v1094 = vrcp.pop %v1093
  %v1095 = vmul.f32 %v1093, %v1094
  %v1096 = vsub.f32 1.0, %v1095
  %v1097 = vmul.f32 %v1094, %v1096
  %v1098 = vadd.f32 %v1094, %v1097
  %vm1099 = vweird.f32 %v1093
  %vm1100 = vweird.f32 %v1094
  %vm1101 = vmor %vm1099, %vm1100
  %v1102 = vsel %vm1101, %v1094, %v1098
  %v1103 = vand.u32 2147483647, %v1093
  %vm1104 = vcmp.eq.f32.partialorder %v1103, 8.507059e+37
  %v1105 = vand.u32 %v1093, 2147483648
  %v1106 = vor.u32 1.1754944e-38, %v1105
  %v1107 = vsel %vm1104, %v1106, %v1102
  %v1108 = vmul.f32 1.0, %v1107
  %v1109 = vtanh.pop %v1089
  %v1110 = vmul.f32 %v1108, %v1008
  %1112 = vrot.lane.b32.xlu0 %v1109, 64
  %v1113 = vpop.permute.xlu0 %1112
  %v1115 = vmul.f32 %v1108, %v1113
  %1117 = vrot.lane.b32.xlu0 %v1115, 32
  %v1118 = vpop.permute.xlu0 %1117
  %v1120 = vadd.f32 %v1110, %v1118
  %v1121 = vtanh.pop %v1120
  %1123 = vrot.lane.b32.xlu0 %v1121, 64
  %v1124 = vpop.permute.xlu0 %1123
  %v1126 = vmul.f32 %v1108, %v1124
  %1128 = vrot.lane.b32.xlu0 %v1126, 32
  %v1129 = vpop.permute.xlu0 %1128
  %v1130 = vsel %vm275, %v1129, 0
  %1132 = vmatpush.msra.mxu0 0.0
  %1133 = vmatpush.msra.mxu0 0.0
  %1134 = vmatpush.msra.mxu0 0.0
  %1135 = vmatpush.msra.mxu0 0.0
  %1136 = vmatpush.msra.mxu0 0.0
  %1137 = vmatpush.msra.mxu0 0.0
  %1138 = vmatpush.msra.mxu0 0.0
  %1139 = vmatpush.msra.mxu0 0.0
  %1140 = vmatpush.msra.mxu0 0.0
  %1141 = vmatpush.msra.mxu0 0.0
  %1142 = vmatpush.msra.mxu0 0.0
  %1143 = vmatpush.msra.mxu0 0.0
  %1144 = vmatpush.msra.mxu0 %v57
  %1145 = vmatpush.msra.mxu0 %v54
  %1146 = vmatpush.msra.mxu0 %v51
  %1147 = vmatpush.msra.mxu0 %v48
  %1148 = vmatmul.f32.gmra.mxu0 %v1130
  %v1149 = vpop.f32.mrf.mxu0
  %v1150 = vadd.f32 0.0, %v1149
  %1151 = vdwg.mxu0
  %1152 = vmatpush.msra.mxu0 0.0
  %1153 = vmatpush.msra.mxu0 0.0
  %1154 = vmatpush.msra.mxu0 0.0
  %1155 = vmatpush.msra.mxu0 0.0
  %1156 = vmatpush.msra.mxu0 0.0
  %1157 = vmatpush.msra.mxu0 0.0
  %1158 = vmatpush.msra.mxu0 0.0
  %1159 = vmatpush.msra.mxu0 0.0
  %1160 = vmatpush.msra.mxu0 0.0
  %1161 = vmatpush.msra.mxu0 0.0
  %1162 = vmatpush.msra.mxu0 0.0
  %1163 = vmatpush.msra.mxu0 0.0
  %1164 = vmatpush.msra.mxu0 %v58
  %1165 = vmatpush.msra.mxu0 %v55
  %1166 = vmatpush.msra.mxu0 %v52
  %1167 = vmatpush.msra.mxu0 %v49
  %1168 = vmatmul.f32.gmra.mxu0 %v1130
  %v1169 = vpop.f32.mrf.mxu0
  %v1170 = vadd.f32 0.0, %v1169
  %1171 = vdwg.mxu0
  %1172 = vmatpush.msra.mxu0 0.0
  %1173 = vmatpush.msra.mxu0 0.0
  %1174 = vmatpush.msra.mxu0 0.0
  %1175 = vmatpush.msra.mxu0 0.0
  %1176 = vmatpush.msra.mxu0 0.0
  %1177 = vmatpush.msra.mxu0 0.0
  %1178 = vmatpush.msra.mxu0 0.0
  %1179 = vmatpush.msra.mxu0 0.0
  %1180 = vmatpush.msra.mxu0 0.0
  %1181 = vmatpush.msra.mxu0 0.0
  %1182 = vmatpush.msra.mxu0 0.0
  %1183 = vmatpush.msra.mxu0 0.0
  %1184 = vmatpush.msra.mxu0 %v59
  %1185 = vmatpush.msra.mxu0 %v56
  %1186 = vmatpush.msra.mxu0 %v53
  %1187 = vmatpush.msra.mxu0 %v50
  %1188 = vmatmul.f32.gmra.mxu0 %v1130
  %v1189 = vpop.f32.mrf.mxu0
  %v1190 = vadd.f32 0.0, %v1189
  %1191 = vdwg.mxu0
  %v1192 = vadd.f32 %v1170, %v233
  %s1193 = sld [smem:[#allocation3 + $0x2]]
  %s1194 = scvt.s32.f32 %s1193
  %v1195 = vstv %s1194
  %v1196 = vmul.f32 %v1195, %v217
  %s1197 = ssub.f32 1.0, %s1194
  %v1198 = vstv %s1197
  %v1199 = vmul.f32 %v1198, %v1192
  %v1200 = vadd.f32 %v1196, %v1199
  %v1201 = vadd.f32 %v1200, %v1150
  %v1202 = vxor.u32 %v1201, 2147483648
  %v1203 = vmul.f32 %v1202, 1.442695
  %v1204 = vpow.pop %v1203
  %v1205 = vadd.f32 %v1204, 1.0
  %v1206 = vrcp.pop %v1205
  %v1207 = vmul.f32 %v1205, %v1206
  %v1208 = vsub.f32 1.0, %v1207
  %v1209 = vmul.f32 %v1206, %v1208
  %v1210 = vadd.f32 %v1206, %v1209
  %vm1211 = vweird.f32 %v1205
  %vm1212 = vweird.f32 %v1206
  %vm1213 = vmor %vm1211, %vm1212
  %v1214 = vsel %vm1213, %v1206, %v1210
  %v1215 = vand.u32 2147483647, %v1205
  %vm1216 = vcmp.eq.f32.partialorder %v1215, 8.507059e+37
  %v1217 = vand.u32 %v1205, 2147483648
  %v1218 = vor.u32 1.1754944e-38, %v1217
  %v1219 = vsel %vm1216, %v1218, %v1214
  %v1220 = vmul.f32 1.0, %v1219
  %v1221 = vtanh.pop %v1201
  %v1222 = vmul.f32 %v1220, %v1120
  %1224 = vrot.lane.b32.xlu0 %v1221, 64
  %v1225 = vpop.permute.xlu0 %1224
  %v1227 = vmul.f32 %v1220, %v1225
  %1229 = vrot.lane.b32.xlu0 %v1227, 32
  %v1230 = vpop.permute.xlu0 %1229
  %v1232 = vadd.f32 %v1222, %v1230
  %v1233 = vtanh.pop %v1232
  %1235 = vrot.lane.b32.xlu0 %v1233, 64
  %v1236 = vpop.permute.xlu0 %1235
  %v1238 = vmul.f32 %v1220, %v1236
  %1240 = vrot.lane.b32.xlu0 %v1238, 32
  %v1241 = vpop.permute.xlu0 %1240
  %v1242 = vsel %vm275, %v1241, 0
  %1244 = vmatpush.msra.mxu0 0.0
  %1245 = vmatpush.msra.mxu0 0.0
  %1246 = vmatpush.msra.mxu0 0.0
  %1247 = vmatpush.msra.mxu0 0.0
  %1248 = vmatpush.msra.mxu0 0.0
  %1249 = vmatpush.msra.mxu0 0.0
  %1250 = vmatpush.msra.mxu0 0.0
  %1251 = vmatpush.msra.mxu0 0.0
  %1252 = vmatpush.msra.mxu0 0.0
  %1253 = vmatpush.msra.mxu0 0.0
  %1254 = vmatpush.msra.mxu0 0.0
  %1255 = vmatpush.msra.mxu0 0.0
  %1256 = vmatpush.msra.mxu0 %v57
  %1257 = vmatpush.msra.mxu0 %v54
  %1258 = vmatpush.msra.mxu0 %v51
  %1259 = vmatpush.msra.mxu0 %v48
  %1260 = vmatmul.f32.gmra.mxu0 %v1242
  %v1261 = vpop.f32.mrf.mxu0
  %v1262 = vadd.f32 0.0, %v1261
  %1263 = vdwg.mxu0
  %1264 = vmatpush.msra.mxu0 0.0
  %1265 = vmatpush.msra.mxu0 0.0
  %1266 = vmatpush.msra.mxu0 0.0
  %1267 = vmatpush.msra.mxu0 0.0
  %1268 = vmatpush.msra.mxu0 0.0
  %1269 = vmatpush.msra.mxu0 0.0
  %1270 = vmatpush.msra.mxu0 0.0
  %1271 = vmatpush.msra.mxu0 0.0
  %1272 = vmatpush.msra.mxu0 0.0
  %1273 = vmatpush.msra.mxu0 0.0
  %1274 = vmatpush.msra.mxu0 0.0
  %1275 = vmatpush.msra.mxu0 0.0
  %1276 = vmatpush.msra.mxu0 %v58
  %1277 = vmatpush.msra.mxu0 %v55
  %1278 = vmatpush.msra.mxu0 %v52
  %1279 = vmatpush.msra.mxu0 %v49
  %1280 = vmatmul.f32.gmra.mxu0 %v1242
  %v1281 = vpop.f32.mrf.mxu0
  %v1282 = vadd.f32 0.0, %v1281
  %1283 = vdwg.mxu0
  %1284 = vmatpush.msra.mxu0 0.0
  %1285 = vmatpush.msra.mxu0 0.0
  %1286 = vmatpush.msra.mxu0 0.0
  %1287 = vmatpush.msra.mxu0 0.0
  %1288 = vmatpush.msra.mxu0 0.0
  %1289 = vmatpush.msra.mxu0 0.0
  %1290 = vmatpush.msra.mxu0 0.0
  %1291 = vmatpush.msra.mxu0 0.0
  %1292 = vmatpush.msra.mxu0 0.0
  %1293 = vmatpush.msra.mxu0 0.0
  %1294 = vmatpush.msra.mxu0 0.0
  %1295 = vmatpush.msra.mxu0 0.0
  %1296 = vmatpush.msra.mxu0 %v59
  %1297 = vmatpush.msra.mxu0 %v56
  %1298 = vmatpush.msra.mxu0 %v53
  %1299 = vmatpush.msra.mxu0 %v50
  %1300 = vmatmul.f32.gmra.mxu0 %v1242
  %v1301 = vpop.f32.mrf.mxu0
  %v1302 = vadd.f32 0.0, %v1301
  %1303 = vdwg.mxu0
  %v1304 = vadd.f32 %v1282, %v233
  %s1305 = sld [smem:[#allocation3 + $0x3]]
  %s1306 = scvt.s32.f32 %s1305
  %v1307 = vstv %s1306
  %v1308 = vmul.f32 %v1307, %v220
  %s1309 = ssub.f32 1.0, %s1306
  %v1310 = vstv %s1309
  %v1311 = vmul.f32 %v1310, %v1304
  %v1312 = vadd.f32 %v1308, %v1311
  %v1313 = vadd.f32 %v1312, %v1262
  %v1314 = vxor.u32 %v1313, 2147483648
  %v1315 = vmul.f32 %v1314, 1.442695
  %v1316 = vpow.pop %v1315
  %v1317 = vadd.f32 %v1316, 1.0
  %v1318 = vrcp.pop %v1317
  %v1319 = vmul.f32 %v1317, %v1318
  %v1320 = vsub.f32 1.0, %v1319
  %v1321 = vmul.f32 %v1318, %v1320
  %v1322 = vadd.f32 %v1318, %v1321
  %vm1323 = vweird.f32 %v1317
  %vm1324 = vweird.f32 %v1318
  %vm1325 = vmor %vm1323, %vm1324
  %v1326 = vsel %vm1325, %v1318, %v1322
  %v1327 = vand.u32 2147483647, %v1317
  %vm1328 = vcmp.eq.f32.partialorder %v1327, 8.507059e+37
  %v1329 = vand.u32 %v1317, 2147483648
  %v1330 = vor.u32 1.1754944e-38, %v1329
  %v1331 = vsel %vm1328, %v1330, %v1326
  %v1332 = vmul.f32 1.0, %v1331
  %v1333 = vtanh.pop %v1313
  %v1334 = vmul.f32 %v1332, %v1232
  %1336 = vrot.lane.b32.xlu0 %v1333, 64
  %v1337 = vpop.permute.xlu0 %1336
  %v1339 = vmul.f32 %v1332, %v1337
  %1341 = vrot.lane.b32.xlu0 %v1339, 32
  %v1342 = vpop.permute.xlu0 %1341
  %v1344 = vadd.f32 %v1334, %v1342
  %v1345 = vtanh.pop %v1344
  %1347 = vrot.lane.b32.xlu0 %v1345, 64
  %v1348 = vpop.permute.xlu0 %1347
  %v1350 = vmul.f32 %v1332, %v1348
  %1352 = vrot.lane.b32.xlu0 %v1350, 32
  %v1353 = vpop.permute.xlu0 %1352
  %v1354 = vsel %vm275, %v1353, 0
  %1356 = vmatpush.msra.mxu0 0.0
  %1357 = vmatpush.msra.mxu0 0.0
  %1358 = vmatpush.msra.mxu0 0.0
  %1359 = vmatpush.msra.mxu0 0.0
  %1360 = vmatpush.msra.mxu0 0.0
  %1361 = vmatpush.msra.mxu0 0.0
  %1362 = vmatpush.msra.mxu0 0.0
  %1363 = vmatpush.msra.mxu0 0.0
  %1364 = vmatpush.msra.mxu0 0.0
  %1365 = vmatpush.msra.mxu0 0.0
  %1366 = vmatpush.msra.mxu0 0.0
  %1367 = vmatpush.msra.mxu0 0.0
  %1368 = vmatpush.msra.mxu0 %v57
  %1369 = vmatpush.msra.mxu0 %v54
  %1370 = vmatpush.msra.mxu0 %v51
  %1371 = vmatpush.msra.mxu0 %v48
  %1372 = vmatmul.f32.gmra.mxu0 %v1354
  %v1373 = vpop.f32.mrf.mxu0
  %v1374 = vadd.f32 0.0, %v1373
  %1375 = vdwg.mxu0
  %1376 = vmatpush.msra.mxu0 0.0
  %1377 = vmatpush.msra.mxu0 0.0
  %1378 = vmatpush.msra.mxu0 0.0
  %1379 = vmatpush.msra.mxu0 0.0
  %1380 = vmatpush.msra.mxu0 0.0
  %1381 = vmatpush.msra.mxu0 0.0
  %1382 = vmatpush.msra.mxu0 0.0
  %1383 = vmatpush.msra.mxu0 0.0
  %1384 = vmatpush.msra.mxu0 0.0
  %1385 = vmatpush.msra.mxu0 0.0
  %1386 = vmatpush.msra.mxu0 0.0
  %1387 = vmatpush.msra.mxu0 0.0
  %1388 = vmatpush.msra.mxu0 %v58
  %1389 = vmatpush.msra.mxu0 %v55
  %1390 = vmatpush.msra.mxu0 %v52
  %1391 = vmatpush.msra.mxu0 %v49
  %1392 = vmatmul.f32.gmra.mxu0 %v1354
  %v1393 = vpop.f32.mrf.mxu0
  %v1394 = vadd.f32 0.0, %v1393
  %1395 = vdwg.mxu0
  %1396 = vmatpush.msra.mxu0 0.0
  %1397 = vmatpush.msra.mxu0 0.0
  %1398 = vmatpush.msra.mxu0 0.0
  %1399 = vmatpush.msra.mxu0 0.0
  %1400 = vmatpush.msra.mxu0 0.0
  %1401 = vmatpush.msra.mxu0 0.0
  %1402 = vmatpush.msra.mxu0 0.0
  %1403 = vmatpush.msra.mxu0 0.0
  %1404 = vmatpush.msra.mxu0 0.0
  %1405 = vmatpush.msra.mxu0 0.0
  %1406 = vmatpush.msra.mxu0 0.0
  %1407 = vmatpush.msra.mxu0 0.0
  %1408 = vmatpush.msra.mxu0 %v59
  %1409 = vmatpush.msra.mxu0 %v56
  %1410 = vmatpush.msra.mxu0 %v53
  %1411 = vmatpush.msra.mxu0 %v50
  %1412 = vmatmul.f32.gmra.mxu0 %v1354
  %v1413 = vpop.f32.mrf.mxu0
  %v1414 = vadd.f32 0.0, %v1413
  %1415 = vdwg.mxu0
  %v1416 = vadd.f32 %v1394, %v233
  %s1417 = sld [smem:[#allocation3 + $0x4]]
  %s1418 = scvt.s32.f32 %s1417
  %v1419 = vstv %s1418
  %v1420 = vmul.f32 %v1419, %v223
  %s1421 = ssub.f32 1.0, %s1418
  %v1422 = vstv %s1421
  %v1423 = vmul.f32 %v1422, %v1416
  %v1424 = vadd.f32 %v1420, %v1423
  %v1425 = vadd.f32 %v1424, %v1374
  %v1426 = vxor.u32 %v1425, 2147483648
  %v1427 = vmul.f32 %v1426, 1.442695
  %v1428 = vpow.pop %v1427
  %v1429 = vadd.f32 %v1428, 1.0
  %v1430 = vrcp.pop %v1429
  %v1431 = vmul.f32 %v1429, %v1430
  %v1432 = vsub.f32 1.0, %v1431
  %v1433 = vmul.f32 %v1430, %v1432
  %v1434 = vadd.f32 %v1430, %v1433
  %vm1435 = vweird.f32 %v1429
  %vm1436 = vweird.f32 %v1430
  %vm1437 = vmor %vm1435, %vm1436
  %v1438 = vsel %vm1437, %v1430, %v1434
  %v1439 = vand.u32 2147483647, %v1429
  %vm1440 = vcmp.eq.f32.partialorder %v1439, 8.507059e+37
  %v1441 = vand.u32 %v1429, 2147483648
  %v1442 = vor.u32 1.1754944e-38, %v1441
  %v1443 = vsel %vm1440, %v1442, %v1438
  %v1444 = vmul.f32 1.0, %v1443
  %v1445 = vtanh.pop %v1425
  %v1446 = vmul.f32 %v1444, %v1344
  %1448 = vrot.lane.b32.xlu0 %v1445, 64
  %v1449 = vpop.permute.xlu0 %1448
  %v1451 = vmul.f32 %v1444, %v1449
  %1453 = vrot.lane.b32.xlu0 %v1451, 32
  %v1454 = vpop.permute.xlu0 %1453
  %v1456 = vadd.f32 %v1446, %v1454
  %v1457 = vtanh.pop %v1456
  %1459 = vrot.lane.b32.xlu0 %v1457, 64
  %v1460 = vpop.permute.xlu0 %1459
  %v1462 = vmul.f32 %v1444, %v1460
  %1464 = vrot.lane.b32.xlu0 %v1462, 32
  %v1465 = vpop.permute.xlu0 %1464
  %v1466 = vsel %vm275, %v1465, 0
  %1468 = vmatpush.msra.mxu0 0.0
  %1469 = vmatpush.msra.mxu0 0.0
  %1470 = vmatpush.msra.mxu0 0.0
  %1471 = vmatpush.msra.mxu0 0.0
  %1472 = vmatpush.msra.mxu0 0.0
  %1473 = vmatpush.msra.mxu0 0.0
  %1474 = vmatpush.msra.mxu0 0.0
  %1475 = vmatpush.msra.mxu0 0.0
  %1476 = vmatpush.msra.mxu0 0.0
  %1477 = vmatpush.msra.mxu0 0.0
  %1478 = vmatpush.msra.mxu0 0.0
  %1479 = vmatpush.msra.mxu0 0.0
  %1480 = vmatpush.msra.mxu0 %v57
  %1481 = vmatpush.msra.mxu0 %v54
  %1482 = vmatpush.msra.mxu0 %v51
  %1483 = vmatpush.msra.mxu0 %v48
  %1484 = vmatmul.f32.gmra.mxu0 %v1466
  %v1485 = vpop.f32.mrf.mxu0
  %v1486 = vadd.f32 0.0, %v1485
  %1487 = vdwg.mxu0
  %1488 = vmatpush.msra.mxu0 0.0
  %1489 = vmatpush.msra.mxu0 0.0
  %1490 = vmatpush.msra.mxu0 0.0
  %1491 = vmatpush.msra.mxu0 0.0
  %1492 = vmatpush.msra.mxu0 0.0
  %1493 = vmatpush.msra.mxu0 0.0
  %1494 = vmatpush.msra.mxu0 0.0
  %1495 = vmatpush.msra.mxu0 0.0
  %1496 = vmatpush.msra.mxu0 0.0
  %1497 = vmatpush.msra.mxu0 0.0
  %1498 = vmatpush.msra.mxu0 0.0
  %1499 = vmatpush.msra.mxu0 0.0
  %1500 = vmatpush.msra.mxu0 %v58
  %1501 = vmatpush.msra.mxu0 %v55
  %1502 = vmatpush.msra.mxu0 %v52
  %1503 = vmatpush.msra.mxu0 %v49
  %1504 = vmatmul.f32.gmra.mxu0 %v1466
  %v1505 = vpop.f32.mrf.mxu0
  %v1506 = vadd.f32 0.0, %v1505
  %1507 = vdwg.mxu0
  %1508 = vmatpush.msra.mxu0 0.0
  %1509 = vmatpush.msra.mxu0 0.0
  %1510 = vmatpush.msra.mxu0 0.0
  %1511 = vmatpush.msra.mxu0 0.0
  %1512 = vmatpush.msra.mxu0 0.0
  %1513 = vmatpush.msra.mxu0 0.0
  %1514 = vmatpush.msra.mxu0 0.0
  %1515 = vmatpush.msra.mxu0 0.0
  %1516 = vmatpush.msra.mxu0 0.0
  %1517 = vmatpush.msra.mxu0 0.0
  %1518 = vmatpush.msra.mxu0 0.0
  %1519 = vmatpush.msra.mxu0 0.0
  %1520 = vmatpush.msra.mxu0 %v59
  %1521 = vmatpush.msra.mxu0 %v56
  %1522 = vmatpush.msra.mxu0 %v53
  %1523 = vmatpush.msra.mxu0 %v50
  %1524 = vmatmul.f32.gmra.mxu0 %v1466
  %v1525 = vpop.f32.mrf.mxu0
  %v1526 = vadd.f32 0.0, %v1525
  %1527 = vdwg.mxu0
  %v1528 = vadd.f32 %v1506, %v233
  %s1529 = sld [smem:[#allocation3 + $0x5]]
  %s1530 = scvt.s32.f32 %s1529
  %v1531 = vstv %s1530
  %v1532 = vmul.f32 %v1531, %v226
  %s1533 = ssub.f32 1.0, %s1530
  %v1534 = vstv %s1533
  %v1535 = vmul.f32 %v1534, %v1528
  %v1536 = vadd.f32 %v1532, %v1535
  %v1537 = vadd.f32 %v1536, %v1486
  %v1538 = vxor.u32 %v1537, 2147483648
  %v1539 = vmul.f32 %v1538, 1.442695
  %v1540 = vpow.pop %v1539
  %v1541 = vadd.f32 %v1540, 1.0
  %v1542 = vrcp.pop %v1541
  %v1543 = vmul.f32 %v1541, %v1542
  %v1544 = vsub.f32 1.0, %v1543
  %v1545 = vmul.f32 %v1542, %v1544
  %v1546 = vadd.f32 %v1542, %v1545
  %vm1547 = vweird.f32 %v1541
  %vm1548 = vweird.f32 %v1542
  %vm1549 = vmor %vm1547, %vm1548
  %v1550 = vsel %vm1549, %v1542, %v1546
  %v1551 = vand.u32 2147483647, %v1541
  %vm1552 = vcmp.eq.f32.partialorder %v1551, 8.507059e+37
  %v1553 = vand.u32 %v1541, 2147483648
  %v1554 = vor.u32 1.1754944e-38, %v1553
  %v1555 = vsel %vm1552, %v1554, %v1550
  %v1556 = vmul.f32 1.0, %v1555
  %v1557 = vtanh.pop %v1537
  %v1558 = vmul.f32 %v1556, %v1456
  %1560 = vrot.lane.b32.xlu0 %v1557, 64
  %v1561 = vpop.permute.xlu0 %1560
  %v1563 = vmul.f32 %v1556, %v1561
  %1565 = vrot.lane.b32.xlu0 %v1563, 32
  %v1566 = vpop.permute.xlu0 %1565
  %v1568 = vadd.f32 %v1558, %v1566
  %v1569 = vtanh.pop %v1568
  %1571 = vrot.lane.b32.xlu0 %v1569, 64
  %v1572 = vpop.permute.xlu0 %1571
  %v1574 = vmul.f32 %v1556, %v1572
  %1576 = vrot.lane.b32.xlu0 %v1574, 32
  %v1577 = vpop.permute.xlu0 %1576
  %v1578 = vsel %vm275, %v1577, 0
  %1580 = vmatpush.msra.mxu0 0.0
  %1581 = vmatpush.msra.mxu0 0.0
  %1582 = vmatpush.msra.mxu0 0.0
  %1583 = vmatpush.msra.mxu0 0.0
  %1584 = vmatpush.msra.mxu0 0.0
  %1585 = vmatpush.msra.mxu0 0.0
  %1586 = vmatpush.msra.mxu0 0.0
  %1587 = vmatpush.msra.mxu0 0.0
  %1588 = vmatpush.msra.mxu0 0.0
  %1589 = vmatpush.msra.mxu0 0.0
  %1590 = vmatpush.msra.mxu0 0.0
  %1591 = vmatpush.msra.mxu0 0.0
  %1592 = vmatpush.msra.mxu0 %v57
  %1593 = vmatpush.msra.mxu0 %v54
  %1594 = vmatpush.msra.mxu0 %v51
  %1595 = vmatpush.msra.mxu0 %v48
  %1596 = vmatmul.f32.gmra.mxu0 %v1578
  %v1597 = vpop.f32.mrf.mxu0
  %v1598 = vadd.f32 0.0, %v1597
  %1599 = vdwg.mxu0
  %1600 = vmatpush.msra.mxu0 0.0
  %1601 = vmatpush.msra.mxu0 0.0
  %1602 = vmatpush.msra.mxu0 0.0
  %1603 = vmatpush.msra.mxu0 0.0
  %1604 = vmatpush.msra.mxu0 0.0
  %1605 = vmatpush.msra.mxu0 0.0
  %1606 = vmatpush.msra.mxu0 0.0
  %1607 = vmatpush.msra.mxu0 0.0
  %1608 = vmatpush.msra.mxu0 0.0
  %1609 = vmatpush.msra.mxu0 0.0
  %1610 = vmatpush.msra.mxu0 0.0
  %1611 = vmatpush.msra.mxu0 0.0
  %1612 = vmatpush.msra.mxu0 %v58
  %1613 = vmatpush.msra.mxu0 %v55
  %1614 = vmatpush.msra.mxu0 %v52
  %1615 = vmatpush.msra.mxu0 %v49
  %1616 = vmatmul.f32.gmra.mxu0 %v1578
  %v1617 = vpop.f32.mrf.mxu0
  %v1618 = vadd.f32 0.0, %v1617
  %1619 = vdwg.mxu0
  %1620 = vmatpush.msra.mxu0 0.0
  %1621 = vmatpush.msra.mxu0 0.0
  %1622 = vmatpush.msra.mxu0 0.0
  %1623 = vmatpush.msra.mxu0 0.0
  %1624 = vmatpush.msra.mxu0 0.0
  %1625 = vmatpush.msra.mxu0 0.0
  %1626 = vmatpush.msra.mxu0 0.0
  %1627 = vmatpush.msra.mxu0 0.0
  %1628 = vmatpush.msra.mxu0 0.0
  %1629 = vmatpush.msra.mxu0 0.0
  %1630 = vmatpush.msra.mxu0 0.0
  %1631 = vmatpush.msra.mxu0 0.0
  %1632 = vmatpush.msra.mxu0 %v59
  %1633 = vmatpush.msra.mxu0 %v56
  %1634 = vmatpush.msra.mxu0 %v53
  %1635 = vmatpush.msra.mxu0 %v50
  %1636 = vmatmul.f32.gmra.mxu0 %v1578
  %v1637 = vpop.f32.mrf.mxu0
  %v1638 = vadd.f32 0.0, %v1637
  %1639 = vdwg.mxu0
  %v1640 = vadd.f32 %v1618, %v233
  %s1641 = sld [smem:[#allocation3 + $0x6]]
  %s1642 = scvt.s32.f32 %s1641
  %v1643 = vstv %s1642
  %v1644 = vmul.f32 %v1643, %v229
  %s1645 = ssub.f32 1.0, %s1642
  %v1646 = vstv %s1645
  %v1647 = vmul.f32 %v1646, %v1640
  %v1648 = vadd.f32 %v1644, %v1647
  %v1649 = vadd.f32 %v1648, %v1598
  %v1650 = vxor.u32 %v1649, 2147483648
  %v1651 = vmul.f32 %v1650, 1.442695
  %v1652 = vpow.pop %v1651
  %v1653 = vadd.f32 %v1652, 1.0
  %v1654 = vrcp.pop %v1653
  %v1655 = vmul.f32 %v1653, %v1654
  %v1656 = vsub.f32 1.0, %v1655
  %v1657 = vmul.f32 %v1654, %v1656
  %v1658 = vadd.f32 %v1654, %v1657
  %vm1659 = vweird.f32 %v1653
  %vm1660 = vweird.f32 %v1654
  %vm1661 = vmor %vm1659, %vm1660
  %v1662 = vsel %vm1661, %v1654, %v1658
  %v1663 = vand.u32 2147483647, %v1653
  %vm1664 = vcmp.eq.f32.partialorder %v1663, 8.507059e+37
  %v1665 = vand.u32 %v1653, 2147483648
  %v1666 = vor.u32 1.1754944e-38, %v1665
  %v1667 = vsel %vm1664, %v1666, %v1662
  %v1668 = vmul.f32 1.0, %v1667
  %v1669 = vtanh.pop %v1649
  %v1670 = vmul.f32 %v1668, %v1568
  %1672 = vrot.lane.b32.xlu0 %v1669, 64
  %v1673 = vpop.permute.xlu0 %1672
  %v1675 = vmul.f32 %v1668, %v1673
  %1677 = vrot.lane.b32.xlu0 %v1675, 32
  %v1678 = vpop.permute.xlu0 %1677
  %v1680 = vadd.f32 %v1670, %v1678
  %v1681 = vtanh.pop %v1680
  %1683 = vrot.lane.b32.xlu0 %v1681, 64
  %v1684 = vpop.permute.xlu0 %1683
  %v1686 = vmul.f32 %v1668, %v1684
  %1688 = vrot.lane.b32.xlu0 %v1686, 32
  %v1689 = vpop.permute.xlu0 %1688
  %v1690 = vsel %vm275, %v1689, 0
  %1692 = vmatpush.msra.mxu0 0.0
  %1693 = vmatpush.msra.mxu0 0.0
  %1694 = vmatpush.msra.mxu0 0.0
  %1695 = vmatpush.msra.mxu0 0.0
  %1696 = vmatpush.msra.mxu0 0.0
  %1697 = vmatpush.msra.mxu0 0.0
  %1698 = vmatpush.msra.mxu0 0.0
  %1699 = vmatpush.msra.mxu0 0.0
  %1700 = vmatpush.msra.mxu0 0.0
  %1701 = vmatpush.msra.mxu0 0.0
  %1702 = vmatpush.msra.mxu0 0.0
  %1703 = vmatpush.msra.mxu0 0.0
  %1704 = vmatpush.msra.mxu0 %v59
  %1705 = vmatpush.msra.mxu0 %v56
  %1706 = vmatpush.msra.mxu0 %v53
  %1707 = vmatpush.msra.mxu0 %v50
  %1708 = vmatmul.f32.gmra.mxu0 %v1690
  %v1709 = vpop.f32.mrf.mxu0
  %v1710 = vadd.f32 0.0, %v1709
  %1711 = vdwg.mxu0
  %v1712 = vld [vmem:[%s10] sm:$0x1]
  %v1714 = vperm.slane %v1712, 0
  %v1716 = vadd.f32 %v966, %v1714
  %v1717 = vadd.f32 %v1078, %v1714
  %v1718 = vadd.f32 %v1190, %v1714
  %v1719 = vadd.f32 %v1302, %v1714
  %v1720 = vadd.f32 %v1414, %v1714
  %v1721 = vadd.f32 %v1526, %v1714
  %v1722 = vadd.f32 %v1638, %v1714
  %v1723 = vadd.f32 %v1710, %v1714
  %1724 = vst.msk [vmem:[%s11] sm:$0xff] %vm75, %v1716
  %1725 = vst.msk [vmem:[%s11 + $0x8] sm:$0xff] %vm75, %v1717
  %1726 = vst.msk [vmem:[%s11 + $0x10] sm:$0xff] %vm75, %v1718
  %1727 = vst.msk [vmem:[%s11 + $0x18] sm:$0xff] %vm75, %v1719
  %1728 = vst.msk [vmem:[%s11 + $0x20] sm:$0xff] %vm75, %v1720
  %1729 = vst.msk [vmem:[%s11 + $0x28] sm:$0xff] %vm75, %v1721
  %1730 = vst.msk [vmem:[%s11 + $0x30] sm:$0xff] %vm75, %v1722
  %1731 = vst.msk [vmem:[%s11 + $0x38] sm:$0xff] %vm75, %v1723
  // Predicated region
  $region42: #{tpu_custom_call.1} parent=0 // pred_check
    _
  $region43: #{tpu_custom_call.1} parent=0 // pred_check_branch
    %1733 = sbr.rel (0) target = $region45
  $region44: #{tpu_custom_call.1} parent=0 // pred_region
    _
  $region45: #{tpu_custom_call.1} parent=0 // pred_fallthru
    _
  // Predicated region
  $region46: #{tpu_custom_call.1} parent=0 // pred_check
    _
  $region47: #{tpu_custom_call.1} parent=0 // pred_check_branch
    %1735 = sbr.rel (0) target = $region49
  $region48: #{tpu_custom_call.1} parent=0 // pred_region
    _
  $region49: #{tpu_custom_call.1} parent=0 // pred_fallthru
    _

</llo_original>
